<compile_context>
chip_gen: v6e
topology: v6e:2x2x1
jax: 0.10.0
libtpu: 0.0.40
codegen_flags: <defaults>
</compile_context>

<pallas_src>
import functools

import jax
import jax.numpy as jnp
from jax.experimental import pallas as pl
from jax.experimental.pallas import tpu as pltpu


def _round_up(x, m):
    return ((x + m - 1) // m) * m


def _cdiv(a, b):
    return -(-a // b)


def _vmem_capacity_bytes():
    """Chip VMEM capacity, with a conservative fallback (v7x per-TC = 64 MiB)."""
    try:
        info = pltpu.get_tpu_info()
        for attr in ("vmem_capacity_bytes", "vmem_size_bytes", "vmem_bytes"):
            v = getattr(info, attr, None)
            if v:
                return int(v)
    except Exception:
        pass
    return 64 << 20


def _const_spec(shape, single_buffer):
    """BlockSpec for a grid-invariant (weight/bias) input.

    Requests single-buffering (the block never changes, so double-buffering it
    just wastes VMEM); falls back to the default if the API is unavailable.
    """
    idx = lambda n: (0,) * len(shape)
    if single_buffer and hasattr(pl, "Buffered"):
        try:
            return pl.BlockSpec(shape, idx, pipeline_mode=pl.Buffered(1))
        except TypeError:
            pass
    return pl.BlockSpec(shape, idx)


def _fitness_readout_kernel(x_ref, mask_ref,
                            w1_ref, b1_ref,
                            w2_ref, b2_ref,
                            w3_ref, b3_ref,
                            w4p_ref, b4p_ref,
                            out_ref, *, lp):
    """One grid step == TB batch elements (rows = TB*Lp already merged).

    x_ref    : (TB*Lp, Fp)  compute dtype (f32 or bf16)
    mask_ref : (TB, Lp)     f32
    wK_ref   : (Fp, Fp)     compute dtype,  bK_ref : (1, Fp) f32
    w4p_ref  : (1, Fp)      f32   (folded  (w4 @ wp)^T)
    b4p_ref  : (1, 1)       f32   (folded   b4 @ wp)
    out_ref  : (1, 1, TB)   f32
    """
    rows, fp = x_ref.shape
    tb = rows // lp

    # --- MLP trunk on the merged (TB*Lp, Fp) view: large MXU M-dimension ---
    h = jnp.dot(x_ref[...], w1_ref[...], preferred_element_type=jnp.float32)
    h = jnp.maximum(h + b1_ref[...], 0.0)
    h = jnp.dot(h.astype(w2_ref.dtype), w2_ref[...],
                preferred_element_type=jnp.float32)
    h = jnp.maximum(h + b2_ref[...], 0.0)
    h = jnp.dot(h.astype(w3_ref.dtype), w3_ref[...],
                preferred_element_type=jnp.float32)
    h = jnp.maximum(h + b3_ref[...], 0.0)                     # (TB*Lp, Fp) f32

    # --- folded layer-4 + projection + mask + sum ---
    #   per_residue = h . w4p + b4p    (lane reduce, no 1-lane MXU output)
    #   ddg_b       = sum_l mask_bl * per_residue_bl
    hw = (h * w4p_ref[...]).reshape(tb, lp, fp)               # leading-dim split
    s = jnp.sum(hw, axis=-1) + b4p_ref[...]                   # (TB, Lp)
    ddg = jnp.sum(s * mask_ref[...], axis=-1)                 # (TB,)
    out_ref[...] = ddg.reshape(1, 1, tb)


def fitness_readout(x, mask, params, *, compute_dtype=jnp.float32, tb=None):
    """x: (N, L, F) f32, mask: (N, L) f32 or None, params: dict of f32 weights.

    compute_dtype: dtype fed to the MXU for the three FxF matmuls.  bfloat16
    is the fast MXU path on every TPU generation (v5e/v6e/v7x); accumulation,
    bias, ReLU, masking and the final reduction always stay in f32.  The f32
    default preserves the module's exact semantics.
    """
    N, L, F = x.shape
    if mask is None:
        mask = jnp.ones((N, L), dtype=jnp.float32)
    mask = mask.astype(jnp.float32)

    compute_dtype = jnp.dtype(compute_dtype)
    w_isz = compute_dtype.itemsize

    # ---- pad to TPU-friendly shapes: F -> lanes (128), L -> sublanes (8) ----
    Fp = _round_up(F, 128)
    Lp = _round_up(L, 8)

    # ---- fold layer 4 + projection (exact; no nonlinearity after layer 4) ----
    hi = jax.lax.Precision.HIGHEST
    w4p = jnp.dot(params["w4"], params["wp"], precision=hi).reshape(1, F)
    b4p = jnp.dot(params["b4"], params["wp"], precision=hi).reshape(1, 1)

    def pad2(a, rows, cols):
        return jnp.pad(a, ((0, rows - a.shape[0]), (0, cols - a.shape[1])))

    w1 = pad2(params["w1"], Fp, Fp).astype(compute_dtype)
    w2 = pad2(params["w2"], Fp, Fp).astype(compute_dtype)
    w3 = pad2(params["w3"], Fp, Fp).astype(compute_dtype)
    b1 = pad2(params["b1"], 1, Fp).astype(jnp.float32)
    b2 = pad2(params["b2"], 1, Fp).astype(jnp.float32)
    b3 = pad2(params["b3"], 1, Fp).astype(jnp.float32)
    w4p = pad2(w4p, 1, Fp).astype(jnp.float32)
    b4p = b4p.astype(jnp.float32)

    # ---- chip-aware VMEM budget ----
    vmem_cap = _vmem_capacity_bytes()
    # leave headroom: 48 MiB on a 64 MiB v7x core, up to 96 MiB on v5e/v6e.
    budget = min(max(vmem_cap - (16 << 20), vmem_cap // 2), 96 << 20)

    weight_bytes = 3 * Fp * Fp * w_isz + 4 * Fp * 4 + 4
    # per-batch-element resident bytes per grid step:
    #   2x double-buffered x rows + ~3 live f32 (Lp, Fp) intermediates
    #   + 2x mask rows + output lane
    per_tb = Lp * Fp * (2 * w_isz + 3 * 4) + 2 * Lp * 4 + 8

    # ---- batch tile: >= 2048 MXU rows / step, lane-dense output, VMEM-bound ----
    if tb is None:
        tb = _round_up(_cdiv(2048, Lp), 128)
        tb = min(tb, max(8, (budget - 2 * weight_bytes) // per_tb))
        tb = min(tb, _round_up(_cdiv(N, 2), 8))      # keep >= 2 grid steps (v7x)
        tb = (tb // 128) * 128 if tb >= 128 else _round_up(tb, 8)
        tb = max(tb, 8)
    tb = int(tb)
    Np = _round_up(max(N, 1), tb)
    nb = Np // tb

    # ---- pre-flattened merged-M view: no in-kernel reshape round-trip ----
    x_p = jnp.pad(x, ((0, Np - N), (0, Lp - L), (0, Fp - F))).astype(compute_dtype)
    x_p = x_p.reshape(Np * Lp, Fp)
    m_p = jnp.pad(mask, ((0, Np - N), (0, Lp - L))).astype(jnp.float32)

    est_vmem = int(tb * per_tb + 2 * weight_bytes + 2 * tb * 4)
    vmem_limit = int(min(max(est_vmem + (8 << 20), 32 << 20),
                         max(vmem_cap - (4 << 20), 32 << 20)))

    flops = 3 * 2 * Np * Lp * Fp * Fp + 5 * Np * Lp * Fp
    # weights counted ONCE: constant index maps keep them VMEM-resident.
    bytes_accessed = int(x_p.size * w_isz + m_p.size * 4 + weight_bytes + Np * 4)

    kern = functools.partial(_fitness_readout_kernel, lp=Lp)

    def build(single_buffer_weights):
        in_specs = [
            pl.BlockSpec((tb * Lp, Fp), lambda n: (n, 0)),    # x rows
            pl.BlockSpec((tb, Lp), lambda n: (n, 0)),         # mask
            _const_spec((Fp, Fp), single_buffer_weights),     # w1
            _const_spec((1, Fp), single_buffer_weights),      # b1
            _const_spec((Fp, Fp), single_buffer_weights),     # w2
            _const_spec((1, Fp), single_buffer_weights),      # b2
            _const_spec((Fp, Fp), single_buffer_weights),     # w3
            _const_spec((1, Fp), single_buffer_weights),      # b3
            _const_spec((1, Fp), single_buffer_weights),      # w4p = (w4 @ wp)^T
            _const_spec((1, 1), single_buffer_weights),       # b4p =  b4 @ wp
        ]
        return pl.pallas_call(
            kern,
            out_shape=jax.ShapeDtypeStruct((nb, 1, tb), jnp.float32),
            grid=(nb,),
            in_specs=in_specs,
            out_specs=pl.BlockSpec((1, 1, tb), lambda n: (n, 0, 0)),
            compiler_params=pltpu.CompilerParams(
                dimension_semantics=("parallel",),
                vmem_limit_bytes=vmem_limit),
            cost_estimate=pl.CostEstimate(flops=flops, transcendentals=0,
                                          bytes_accessed=bytes_accessed),
        )

    args = (x_p, m_p, w1, b1, w2, b2, w3, b3, w4p, b4p)
    try:
        out = build(True)(*args)
    except Exception:
        # pl.Buffered(1) not supported by this jax/Mosaic build: fall back to
        # default double-buffered weight blocks (correctness unchanged).
        out = build(False)(*args)

    return out.reshape(Np)[:N]


def init_params(key, feat_dim):
    """Deterministic parameter init (shapes mirror the nn.Module)."""
    keys = jax.random.split(key, 9)
    scale = 1.0 / jnp.sqrt(feat_dim)
    p = {}
    for i in range(4):
        p[f"w{i+1}"] = (jax.random.normal(keys[2 * i], (feat_dim, feat_dim),
                                          dtype=jnp.float32) * scale)
        p[f"b{i+1}"] = (jax.random.normal(keys[2 * i + 1], (1, feat_dim),
                                          dtype=jnp.float32) * scale)
    p["wp"] = jax.random.normal(keys[8], (feat_dim, 1), dtype=jnp.float32) * scale
    return p


def reference_forward(x, mask, p, compute_dtype=jnp.float32):
    """Pure-JAX reference matching the PyTorch forward.

    With compute_dtype=f32 this is exactly the module's math; with bf16 it
    mirrors the kernel's MXU-input casts (f32 accumulation) for a tight check.
    """
    cd = jnp.dtype(compute_dtype)
    hi = jax.lax.Precision.HIGHEST

    def mm(a, w):
        return jnp.dot(a.astype(cd), w.astype(cd),
                       preferred_element_type=jnp.float32, precision=hi)

    h = jax.nn.relu(mm(x, p["w1"]) + p["b1"][0])
    h = jax.nn.relu(mm(h, p["w2"]) + p["b2"][0])
    h = jax.nn.relu(mm(h, p["w3"]) + p["b3"][0])
    h = jnp.dot(h, p["w4"], precision=hi) + p["b4"][0]        # layer 4 (no ReLU)
    per_residue = jnp.dot(h, p["wp"], precision=hi)[..., 0]   # (N, L)
    if mask is not None:
        per_residue = per_residue * mask
    return per_residue.sum(axis=1)                            # (N,)


if __name__ == "__main__":
    N, L, F = 2, 8, 32
    key = jax.random.PRNGKey(0)
    k_x, k_m, k_p = jax.random.split(key, 3)

    x = jax.random.normal(k_x, (N, L, F), dtype=jnp.float32)
    mask = jax.random.bernoulli(k_m, p=0.8, shape=(N, L)).astype(jnp.float32)
    params = init_params(k_p, F)

    # f32 path: exact module semantics (layer-4/projection folding is exact up
    # to FP summation order).
    ddg = jax.block_until_ready(fitness_readout(x, mask, params))
    ddg_ref = reference_forward(x, mask, params)
    assert ddg.shape == (N,)
    assert jnp.allclose(ddg, ddg_ref, atol=2e-3, rtol=2e-3), (ddg, ddg_ref)

    # mask=None path.
    ddg_nm = jax.block_until_ready(fitness_readout(x, None, params))
    ddg_nm_ref = reference_forward(x, None, params)
    assert jnp.allclose(ddg_nm, ddg_nm_ref, atol=2e-3, rtol=2e-3), (ddg_nm, ddg_nm_ref)

    # bf16 MXU fast path (all TPU generations), checked against a
    # cast-mirrored reference.
    ddg_bf = jax.block_until_ready(
        fitness_readout(x, mask, params, compute_dtype=jnp.bfloat16))
    ddg_bf_ref = reference_forward(x, mask, params, compute_dtype=jnp.bfloat16)
    assert jnp.allclose(ddg_bf, ddg_bf_ref, atol=5e-2, rtol=5e-2), (ddg_bf, ddg_bf_ref)

    print("KERNEL_OK")
</pallas_src>

<mosaic_0001>
module attributes {stable_mosaic.version = 11 : i64} {
  func.func @_fitness_readout_kernel(%arg0: i32, %arg1: memref<64x128xf32, #tpu.memory_space<vmem>>, %arg2: memref<8x8xf32, #tpu.memory_space<vmem>>, %arg3: memref<128x128xf32, #tpu.memory_space<vmem>>, %arg4: memref<1x128xf32, #tpu.memory_space<vmem>>, %arg5: memref<128x128xf32, #tpu.memory_space<vmem>>, %arg6: memref<1x128xf32, #tpu.memory_space<vmem>>, %arg7: memref<128x128xf32, #tpu.memory_space<vmem>>, %arg8: memref<1x128xf32, #tpu.memory_space<vmem>>, %arg9: memref<1x128xf32, #tpu.memory_space<vmem>>, %arg10: memref<1x1xf32, #tpu.memory_space<vmem>>, %arg11: memref<1x1x8xf32, #tpu.memory_space<vmem>>) attributes {dimension_semantics = [#tpu.dimension_semantics<parallel>], iteration_bounds = array<i64: 1>, scalar_prefetch = 0 : i64, scratch_operands = 0 : i64, tpu.core_type = #tpu.core_type<tc>, window_params = [{transform_indices = @transform_0, window_bounds = array<i64: 64, 128>}, {transform_indices = @transform_1, window_bounds = array<i64: 8, 8>}, {pipeline_mode = #tpu.pipeline_mode<synchronous>, transform_indices = @transform_2, window_bounds = array<i64: 128, 128>}, {pipeline_mode = #tpu.pipeline_mode<synchronous>, transform_indices = @transform_3, window_bounds = array<i64: 1, 128>}, {pipeline_mode = #tpu.pipeline_mode<synchronous>, transform_indices = @transform_4, window_bounds = array<i64: 128, 128>}, {pipeline_mode = #tpu.pipeline_mode<synchronous>, transform_indices = @transform_5, window_bounds = array<i64: 1, 128>}, {pipeline_mode = #tpu.pipeline_mode<synchronous>, transform_indices = @transform_6, window_bounds = array<i64: 128, 128>}, {pipeline_mode = #tpu.pipeline_mode<synchronous>, transform_indices = @transform_7, window_bounds = array<i64: 1, 128>}, {pipeline_mode = #tpu.pipeline_mode<synchronous>, transform_indices = @transform_8, window_bounds = array<i64: 1, 128>}, {pipeline_mode = #tpu.pipeline_mode<synchronous>, transform_indices = @transform_9, window_bounds = array<i64: 1, 1>}, {transform_indices = @transform_10, window_bounds = array<i64: 1, 1, 8>}]} {
    %c0 = arith.constant 0 : index
    %c0_0 = arith.constant 0 : index
    %0 = vector.load %arg1[%c0, %c0_0] : memref<64x128xf32, #tpu.memory_space<vmem>>, vector<64x128xf32>
    %c0_1 = arith.constant 0 : index
    %c0_2 = arith.constant 0 : index
    %1 = vector.load %arg3[%c0_1, %c0_2] : memref<128x128xf32, #tpu.memory_space<vmem>>, vector<128x128xf32>
    %cst = arith.constant dense<0.000000e+00> : vector<64x128xf32>
    %2 = tpu.matmul %0, %1, %cst {dimension_numbers = #tpu.dot_dimension_numbers<[1], [0], [0], [1], [0, 0, 1, 1], [], []>} : vector<64x128xf32>, vector<128x128xf32>, vector<64x128xf32> -> vector<64x128xf32>
    %c0_3 = arith.constant 0 : index
    %c0_4 = arith.constant 0 : index
    %3 = vector.load %arg4[%c0_3, %c0_4] : memref<1x128xf32, #tpu.memory_space<vmem>>, vector<1x128xf32>
    %4 = vector.broadcast %3 : vector<1x128xf32> to vector<64x128xf32>
    %5 = arith.addf %2, %4 : vector<64x128xf32>
    %cst_5 = arith.constant 0.000000e+00 : f32
    %6 = vector.broadcast %cst_5 : f32 to vector<64x128xf32>
    %7 = arith.maximumf %5, %6 : vector<64x128xf32>
    %c0_6 = arith.constant 0 : index
    %c0_7 = arith.constant 0 : index
    %8 = vector.load %arg5[%c0_6, %c0_7] : memref<128x128xf32, #tpu.memory_space<vmem>>, vector<128x128xf32>
    %cst_8 = arith.constant dense<0.000000e+00> : vector<64x128xf32>
    %9 = tpu.matmul %7, %8, %cst_8 {dimension_numbers = #tpu.dot_dimension_numbers<[1], [0], [0], [1], [0, 0, 1, 1], [], []>} : vector<64x128xf32>, vector<128x128xf32>, vector<64x128xf32> -> vector<64x128xf32>
    %c0_9 = arith.constant 0 : index
    %c0_10 = arith.constant 0 : index
    %10 = vector.load %arg6[%c0_9, %c0_10] : memref<1x128xf32, #tpu.memory_space<vmem>>, vector<1x128xf32>
    %11 = vector.broadcast %10 : vector<1x128xf32> to vector<64x128xf32>
    %12 = arith.addf %9, %11 : vector<64x128xf32>
    %cst_11 = arith.constant 0.000000e+00 : f32
    %13 = vector.broadcast %cst_11 : f32 to vector<64x128xf32>
    %14 = arith.maximumf %12, %13 : vector<64x128xf32>
    %c0_12 = arith.constant 0 : index
    %c0_13 = arith.constant 0 : index
    %15 = vector.load %arg7[%c0_12, %c0_13] : memref<128x128xf32, #tpu.memory_space<vmem>>, vector<128x128xf32>
    %cst_14 = arith.constant dense<0.000000e+00> : vector<64x128xf32>
    %16 = tpu.matmul %14, %15, %cst_14 {dimension_numbers = #tpu.dot_dimension_numbers<[1], [0], [0], [1], [0, 0, 1, 1], [], []>} : vector<64x128xf32>, vector<128x128xf32>, vector<64x128xf32> -> vector<64x128xf32>
    %c0_15 = arith.constant 0 : index
    %c0_16 = arith.constant 0 : index
    %17 = vector.load %arg8[%c0_15, %c0_16] : memref<1x128xf32, #tpu.memory_space<vmem>>, vector<1x128xf32>
    %18 = vector.broadcast %17 : vector<1x128xf32> to vector<64x128xf32>
    %19 = arith.addf %16, %18 : vector<64x128xf32>
    %cst_17 = arith.constant 0.000000e+00 : f32
    %20 = vector.broadcast %cst_17 : f32 to vector<64x128xf32>
    %21 = arith.maximumf %19, %20 : vector<64x128xf32>
    %c0_18 = arith.constant 0 : index
    %c0_19 = arith.constant 0 : index
    %22 = vector.load %arg9[%c0_18, %c0_19] : memref<1x128xf32, #tpu.memory_space<vmem>>, vector<1x128xf32>
    %23 = vector.broadcast %22 : vector<1x128xf32> to vector<64x128xf32>
    %24 = arith.mulf %21, %23 : vector<64x128xf32>
    %25 = vector.shape_cast %24 : vector<64x128xf32> to vector<8x8x128xf32>
    %cst_20 = arith.constant dense<0.000000e+00> : vector<8x8xf32>
    %26 = vector.multi_reduction <add>, %25, %cst_20 [2] : vector<8x8x128xf32> to vector<8x8xf32>
    %c0_21 = arith.constant 0 : index
    %c0_22 = arith.constant 0 : index
    %27 = vector.load %arg10[%c0_21, %c0_22] : memref<1x1xf32, #tpu.memory_space<vmem>>, vector<1x1xf32>
    %28 = vector.broadcast %27 : vector<1x1xf32> to vector<8x8xf32>
    %29 = arith.addf %26, %28 : vector<8x8xf32>
    %c0_23 = arith.constant 0 : index
    %c0_24 = arith.constant 0 : index
    %30 = vector.load %arg2[%c0_23, %c0_24] : memref<8x8xf32, #tpu.memory_space<vmem>>, vector<8x8xf32>
    %31 = arith.mulf %29, %30 : vector<8x8xf32>
    %cst_25 = arith.constant dense<0.000000e+00> : vector<8xf32>
    %32 = vector.multi_reduction <add>, %31, %cst_25 [1] : vector<8x8xf32> to vector<8xf32>
    %33 = vector.shape_cast %32 : vector<8xf32> to vector<1x1x8xf32>
    %c0_26 = arith.constant 0 : index
    %c0_27 = arith.constant 0 : index
    %c0_28 = arith.constant 0 : index
    %34 = vector.load %arg11[%c0_26, %c0_27, %c0_28] : memref<1x1x8xf32, #tpu.memory_space<vmem>>, vector<1x1x8xf32>
    tpu.vector_store %arg11[%c0_26, %c0_27, %c0_28], %33 {strides = array<i32>} : memref<1x1x8xf32, #tpu.memory_space<vmem>>, vector<1x1x8xf32>,
    return
  }
  func.func @transform_0(%arg0: i32) -> (i32, i32) {
    %c0_i32 = arith.constant 0 : i32
    %c0_i32_0 = arith.constant 0 : i32
    return %arg0, %c0_i32 : i32, i32
  }
  func.func @transform_1(%arg0: i32) -> (i32, i32) {
    %c0_i32 = arith.constant 0 : i32
    %c0_i32_0 = arith.constant 0 : i32
    return %arg0, %c0_i32 : i32, i32
  }
  func.func @transform_2(%arg0: i32) -> (i32, i32) {
    %c0_i32 = arith.constant 0 : i32
    %c0_i32_0 = arith.constant 0 : i32
    %c0_i32_1 = arith.constant 0 : i32
    return %c0_i32, %c0_i32_0 : i32, i32
  }
  func.func @transform_3(%arg0: i32) -> (i32, i32) {
    %c0_i32 = arith.constant 0 : i32
    %c0_i32_0 = arith.constant 0 : i32
    %c0_i32_1 = arith.constant 0 : i32
    return %c0_i32, %c0_i32_0 : i32, i32
  }
  func.func @transform_4(%arg0: i32) -> (i32, i32) {
    %c0_i32 = arith.constant 0 : i32
    %c0_i32_0 = arith.constant 0 : i32
    %c0_i32_1 = arith.constant 0 : i32
    return %c0_i32, %c0_i32_0 : i32, i32
  }
  func.func @transform_5(%arg0: i32) -> (i32, i32) {
    %c0_i32 = arith.constant 0 : i32
    %c0_i32_0 = arith.constant 0 : i32
    %c0_i32_1 = arith.constant 0 : i32
    return %c0_i32, %c0_i32_0 : i32, i32
  }
  func.func @transform_6(%arg0: i32) -> (i32, i32) {
    %c0_i32 = arith.constant 0 : i32
    %c0_i32_0 = arith.constant 0 : i32
    %c0_i32_1 = arith.constant 0 : i32
    return %c0_i32, %c0_i32_0 : i32, i32
  }
  func.func @transform_7(%arg0: i32) -> (i32, i32) {
    %c0_i32 = arith.constant 0 : i32
    %c0_i32_0 = arith.constant 0 : i32
    %c0_i32_1 = arith.constant 0 : i32
    return %c0_i32, %c0_i32_0 : i32, i32
  }
  func.func @transform_8(%arg0: i32) -> (i32, i32) {
    %c0_i32 = arith.constant 0 : i32
    %c0_i32_0 = arith.constant 0 : i32
    %c0_i32_1 = arith.constant 0 : i32
    return %c0_i32, %c0_i32_0 : i32, i32
  }
  func.func @transform_9(%arg0: i32) -> (i32, i32) {
    %c0_i32 = arith.constant 0 : i32
    %c0_i32_0 = arith.constant 0 : i32
    %c0_i32_1 = arith.constant 0 : i32
    return %c0_i32, %c0_i32_0 : i32, i32
  }
  func.func @transform_10(%arg0: i32) -> (i32, i32, i32) {
    %c0_i32 = arith.constant 0 : i32
    %c0_i32_0 = arith.constant 0 : i32
    %c0_i32_1 = arith.constant 0 : i32
    return %arg0, %c0_i32, %c0_i32_0 : i32, i32, i32
  }
}

module attributes {stable_mosaic.version = 11 : i64} {
  func.func @_fitness_readout_kernel(%arg0: i32, %arg1: memref<64x128xf32, #tpu.memory_space<vmem>>, %arg2: memref<8x8xf32, #tpu.memory_space<vmem>>, %arg3: memref<128x128xf32, #tpu.memory_space<vmem>>, %arg4: memref<1x128xf32, #tpu.memory_space<vmem>>, %arg5: memref<128x128xf32, #tpu.memory_space<vmem>>, %arg6: memref<1x128xf32, #tpu.memory_space<vmem>>, %arg7: memref<128x128xf32, #tpu.memory_space<vmem>>, %arg8: memref<1x128xf32, #tpu.memory_space<vmem>>, %arg9: memref<1x128xf32, #tpu.memory_space<vmem>>, %arg10: memref<1x1xf32, #tpu.memory_space<vmem>>, %arg11: memref<1x1x8xf32, #tpu.memory_space<vmem>>) attributes {dimension_semantics = [#tpu.dimension_semantics<parallel>], iteration_bounds = array<i64: 1>, scalar_prefetch = 0 : i64, scratch_operands = 0 : i64, tpu.core_type = #tpu.core_type<tc>, window_params = [{transform_indices = @transform_0, window_bounds = array<i64: 64, 128>}, {transform_indices = @transform_1, window_bounds = array<i64: 8, 8>}, {pipeline_mode = #tpu.pipeline_mode<synchronous>, transform_indices = @transform_2, window_bounds = array<i64: 128, 128>}, {pipeline_mode = #tpu.pipeline_mode<synchronous>, transform_indices = @transform_3, window_bounds = array<i64: 1, 128>}, {pipeline_mode = #tpu.pipeline_mode<synchronous>, transform_indices = @transform_4, window_bounds = array<i64: 128, 128>}, {pipeline_mode = #tpu.pipeline_mode<synchronous>, transform_indices = @transform_5, window_bounds = array<i64: 1, 128>}, {pipeline_mode = #tpu.pipeline_mode<synchronous>, transform_indices = @transform_6, window_bounds = array<i64: 128, 128>}, {pipeline_mode = #tpu.pipeline_mode<synchronous>, transform_indices = @transform_7, window_bounds = array<i64: 1, 128>}, {pipeline_mode = #tpu.pipeline_mode<synchronous>, transform_indices = @transform_8, window_bounds = array<i64: 1, 128>}, {pipeline_mode = #tpu.pipeline_mode<synchronous>, transform_indices = @transform_9, window_bounds = array<i64: 1, 1>}, {transform_indices = @transform_10, window_bounds = array<i64: 1, 1, 8>}]} {
    %c0 = arith.constant 0 : index
    %c0_0 = arith.constant 0 : index
    %0 = vector.load %arg1[%c0, %c0_0] : memref<64x128xf32, #tpu.memory_space<vmem>>, vector<64x128xf32>
    %c0_1 = arith.constant 0 : index
    %c0_2 = arith.constant 0 : index
    %1 = vector.load %arg3[%c0_1, %c0_2] : memref<128x128xf32, #tpu.memory_space<vmem>>, vector<128x128xf32>
    %cst = arith.constant dense<0.000000e+00> : vector<64x128xf32>
    %2 = tpu.matmul %0, %1, %cst {dimension_numbers = #tpu.dot_dimension_numbers<[1], [0], [0], [1], [0, 0, 1, 1], [], []>} : vector<64x128xf32>, vector<128x128xf32>, vector<64x128xf32> -> vector<64x128xf32>
    %c0_3 = arith.constant 0 : index
    %c0_4 = arith.constant 0 : index
    %3 = vector.load %arg4[%c0_3, %c0_4] : memref<1x128xf32, #tpu.memory_space<vmem>>, vector<1x128xf32>
    %4 = vector.broadcast %3 : vector<1x128xf32> to vector<64x128xf32>
    %5 = arith.addf %2, %4 : vector<64x128xf32>
    %cst_5 = arith.constant 0.000000e+00 : f32
    %6 = vector.broadcast %cst_5 : f32 to vector<64x128xf32>
    %7 = arith.maximumf %5, %6 : vector<64x128xf32>
    %c0_6 = arith.constant 0 : index
    %c0_7 = arith.constant 0 : index
    %8 = vector.load %arg5[%c0_6, %c0_7] : memref<128x128xf32, #tpu.memory_space<vmem>>, vector<128x128xf32>
    %cst_8 = arith.constant dense<0.000000e+00> : vector<64x128xf32>
    %9 = tpu.matmul %7, %8, %cst_8 {dimension_numbers = #tpu.dot_dimension_numbers<[1], [0], [0], [1], [0, 0, 1, 1], [], []>} : vector<64x128xf32>, vector<128x128xf32>, vector<64x128xf32> -> vector<64x128xf32>
    %c0_9 = arith.constant 0 : index
    %c0_10 = arith.constant 0 : index
    %10 = vector.load %arg6[%c0_9, %c0_10] : memref<1x128xf32, #tpu.memory_space<vmem>>, vector<1x128xf32>
    %11 = vector.broadcast %10 : vector<1x128xf32> to vector<64x128xf32>
    %12 = arith.addf %9, %11 : vector<64x128xf32>
    %cst_11 = arith.constant 0.000000e+00 : f32
    %13 = vector.broadcast %cst_11 : f32 to vector<64x128xf32>
    %14 = arith.maximumf %12, %13 : vector<64x128xf32>
    %c0_12 = arith.constant 0 : index
    %c0_13 = arith.constant 0 : index
    %15 = vector.load %arg7[%c0_12, %c0_13] : memref<128x128xf32, #tpu.memory_space<vmem>>, vector<128x128xf32>
    %cst_14 = arith.constant dense<0.000000e+00> : vector<64x128xf32>
    %16 = tpu.matmul %14, %15, %cst_14 {dimension_numbers = #tpu.dot_dimension_numbers<[1], [0], [0], [1], [0, 0, 1, 1], [], []>} : vector<64x128xf32>, vector<128x128xf32>, vector<64x128xf32> -> vector<64x128xf32>
    %c0_15 = arith.constant 0 : index
    %c0_16 = arith.constant 0 : index
    %17 = vector.load %arg8[%c0_15, %c0_16] : memref<1x128xf32, #tpu.memory_space<vmem>>, vector<1x128xf32>
    %18 = vector.broadcast %17 : vector<1x128xf32> to vector<64x128xf32>
    %19 = arith.addf %16, %18 : vector<64x128xf32>
    %cst_17 = arith.constant 0.000000e+00 : f32
    %20 = vector.broadcast %cst_17 : f32 to vector<64x128xf32>
    %21 = arith.maximumf %19, %20 : vector<64x128xf32>
    %c0_18 = arith.constant 0 : index
    %c0_19 = arith.constant 0 : index
    %22 = vector.load %arg9[%c0_18, %c0_19] : memref<1x128xf32, #tpu.memory_space<vmem>>, vector<1x128xf32>
    %23 = vector.broadcast %22 : vector<1x128xf32> to vector<64x128xf32>
    %24 = arith.mulf %21, %23 : vector<64x128xf32>
    %25 = vector.shape_cast %24 : vector<64x128xf32> to vector<8x8x128xf32>
    %cst_20 = arith.constant dense<0.000000e+00> : vector<8x8xf32>
    %26 = vector.multi_reduction <add>, %25, %cst_20 [2] : vector<8x8x128xf32> to vector<8x8xf32>
    %c0_21 = arith.constant 0 : index
    %c0_22 = arith.constant 0 : index
    %27 = vector.load %arg10[%c0_21, %c0_22] : memref<1x1xf32, #tpu.memory_space<vmem>>, vector<1x1xf32>
    %28 = vector.broadcast %27 : vector<1x1xf32> to vector<8x8xf32>
    %29 = arith.addf %26, %28 : vector<8x8xf32>
    %c0_23 = arith.constant 0 : index
    %c0_24 = arith.constant 0 : index
    %30 = vector.load %arg2[%c0_23, %c0_24] : memref<8x8xf32, #tpu.memory_space<vmem>>, vector<8x8xf32>
    %31 = arith.mulf %29, %30 : vector<8x8xf32>
    %cst_25 = arith.constant dense<0.000000e+00> : vector<8xf32>
    %32 = vector.multi_reduction <add>, %31, %cst_25 [1] : vector<8x8xf32> to vector<8xf32>
    %33 = vector.shape_cast %32 : vector<8xf32> to vector<1x1x8xf32>
    %c0_26 = arith.constant 0 : index
    %c0_27 = arith.constant 0 : index
    %c0_28 = arith.constant 0 : index
    %34 = vector.load %arg11[%c0_26, %c0_27, %c0_28] : memref<1x1x8xf32, #tpu.memory_space<vmem>>, vector<1x1x8xf32>
    tpu.vector_store %arg11[%c0_26, %c0_27, %c0_28], %33 {strides = array<i32>} : memref<1x1x8xf32, #tpu.memory_space<vmem>>, vector<1x1x8xf32>,
    return
  }
  func.func @transform_0(%arg0: i32) -> (i32, i32) {
    %c0_i32 = arith.constant 0 : i32
    %c0_i32_0 = arith.constant 0 : i32
    return %arg0, %c0_i32 : i32, i32
  }
  func.func @transform_1(%arg0: i32) -> (i32, i32) {
    %c0_i32 = arith.constant 0 : i32
    %c0_i32_0 = arith.constant 0 : i32
    return %arg0, %c0_i32 : i32, i32
  }
  func.func @transform_2(%arg0: i32) -> (i32, i32) {
    %c0_i32 = arith.constant 0 : i32
    %c0_i32_0 = arith.constant 0 : i32
    %c0_i32_1 = arith.constant 0 : i32
    return %c0_i32, %c0_i32_0 : i32, i32
  }
  func.func @transform_3(%arg0: i32) -> (i32, i32) {
    %c0_i32 = arith.constant 0 : i32
    %c0_i32_0 = arith.constant 0 : i32
    %c0_i32_1 = arith.constant 0 : i32
    return %c0_i32, %c0_i32_0 : i32, i32
  }
  func.func @transform_4(%arg0: i32) -> (i32, i32) {
    %c0_i32 = arith.constant 0 : i32
    %c0_i32_0 = arith.constant 0 : i32
    %c0_i32_1 = arith.constant 0 : i32
    return %c0_i32, %c0_i32_0 : i32, i32
  }
  func.func @transform_5(%arg0: i32) -> (i32, i32) {
    %c0_i32 = arith.constant 0 : i32
    %c0_i32_0 = arith.constant 0 : i32
    %c0_i32_1 = arith.constant 0 : i32
    return %c0_i32, %c0_i32_0 : i32, i32
  }
  func.func @transform_6(%arg0: i32) -> (i32, i32) {
    %c0_i32 = arith.constant 0 : i32
    %c0_i32_0 = arith.constant 0 : i32
    %c0_i32_1 = arith.constant 0 : i32
    return %c0_i32, %c0_i32_0 : i32, i32
  }
  func.func @transform_7(%arg0: i32) -> (i32, i32) {
    %c0_i32 = arith.constant 0 : i32
    %c0_i32_0 = arith.constant 0 : i32
    %c0_i32_1 = arith.constant 0 : i32
    return %c0_i32, %c0_i32_0 : i32, i32
  }
  func.func @transform_8(%arg0: i32) -> (i32, i32) {
    %c0_i32 = arith.constant 0 : i32
    %c0_i32_0 = arith.constant 0 : i32
    %c0_i32_1 = arith.constant 0 : i32
    return %c0_i32, %c0_i32_0 : i32, i32
  }
  func.func @transform_9(%arg0: i32) -> (i32, i32) {
    %c0_i32 = arith.constant 0 : i32
    %c0_i32_0 = arith.constant 0 : i32
    %c0_i32_1 = arith.constant 0 : i32
    return %c0_i32, %c0_i32_0 : i32, i32
  }
  func.func @transform_10(%arg0: i32) -> (i32, i32, i32) {
    %c0_i32 = arith.constant 0 : i32
    %c0_i32_0 = arith.constant 0 : i32
    %c0_i32_1 = arith.constant 0 : i32
    return %arg0, %c0_i32, %c0_i32_0 : i32, i32, i32
  }
}

</mosaic_0001>

<llo_original>
// kernel: tpu_custom_call.1
$region0: #{tpu_custom_call.1}
  #allocation0 [shape = 'u32[]', space=smem, size = 0x4, offset = 0x4, fixed_abs, tag = 'smem constant byte address 0x4 - core index']
  #allocation1 [shape = 'u32[144,128]{1,0:T(1,128)}', space=vmem, size = 0x12000, scoped, tag = 'internal scratch']
  #allocation2 [shape = 'f32[1,1]{1,0:T(1,128)S(1)}', space=vmem, size = 0x200, scoped, tag = 'scoped memory for tpu_custom_call.1']
  %s0 = inlined_call_operand.hbm [shape: f32[64,128], index: 0, kind: input, shape index: {}]
  %s1 = inlined_call_operand.hbm [shape: f32[8,8], index: 1, kind: input, shape index: {}]
  %s2 = inlined_call_operand.hbm [shape: f32[128,128], index: 2, kind: input, shape index: {}]
  %s3 = inlined_call_operand.vmem [shape: f32[1,128], index: 3, kind: input, shape index: {}]
  %s4 = inlined_call_operand.hbm [shape: f32[128,128], index: 4, kind: input, shape index: {}]
  %s5 = inlined_call_operand.vmem [shape: f32[1,128], index: 5, kind: input, shape index: {}]
  %s6 = inlined_call_operand.hbm [shape: f32[128,128], index: 6, kind: input, shape index: {}]
  %s7 = inlined_call_operand.vmem [shape: f32[1,128], index: 7, kind: input, shape index: {}]
  %s8 = inlined_call_operand.vmem [shape: f32[1,128], index: 8, kind: input, shape index: {}]
  %s9 = inlined_call_operand.<no memory space> [shape: f32[1,1], index: 9, kind: input, shape index: {}]
  %s10 = inlined_call_operand.hbm [shape: f32[1,1,8], index: 10, kind: output, shape index: {}]
  %s11 = sld [smem:[#allocation0]]
  $region70: #{tpu_custom_call.1} parent=0
    _
  %s13 = ssub.s32 1, %s11
  %s14 = scalar_select 0, %s13, %s11
  %v15 = vstv %s9
  %16 = vst [vmem:[#allocation2] sm:$0x1] %v15
  $region1: #{tpu_custom_call.1} parent=0
    #allocation3 [shape = 'u8[32768]{0}', space=vmem, size = 0x8000, scoped, tag = 'input window, operand 0, single buffered']
    #allocation4 [shape = 's32[1]{0}', space=sflag, size = 0x4, scoped, tag = 'scoped memory for tpu_custom_call.1']
    #allocation5 [shape = 's32[1]{0}', space=sflag, size = 0x4, scoped, tag = 'scoped memory for tpu_custom_call.1']
    #allocation6 [shape = 'u8[4096]{0}', space=vmem, size = 0x1000, scoped, tag = 'input window, operand 1, single buffered']
    #allocation7 [shape = 's32[1]{0}', space=sflag, size = 0x4, scoped, tag = 'scoped memory for tpu_custom_call.1']
    #allocation8 [shape = 'u8[65536]{0}', space=vmem, size = 0x10000, scoped, tag = 'input window, operand 2, single buffered']
    #allocation9 [shape = 'u8[65536]{0}', space=vmem, size = 0x10000, scoped, tag = 'input window, operand 4, single buffered']
    #allocation10 [shape = 's32[1]{0}', space=sflag, size = 0x4, scoped, tag = 'scoped memory for tpu_custom_call.1']
    #allocation11 [shape = 'u8[65536]{0}', space=vmem, size = 0x10000, scoped, tag = 'input window, operand 6, single buffered']
    #allocation12 [shape = 'u8[512]{0}', space=vmem, size = 0x400, scoped, tag = 'output window, operand 0, single buffered']
    %17 = vsyncpa [#allocation4], 0
    %18 = vsyncpa [#allocation7], 0
    %19 = vsyncpa [#allocation10], 0
    %20 = vsyncpa [#allocation5], 0
    // Predicated region
    $region2: #{tpu_custom_call.1} parent=1 // pred_check
      _
    $region3: #{tpu_custom_call.1} parent=1 // pred_check_branch
      %22 = sbr.rel (0) target = $region5
    $region4: #{tpu_custom_call.1} parent=1 // pred_region
      %s24 = ssub.s32 1024, 1024
      %25 = vsyncadd [#allocation4], %s24
      %s26 = sshll.u32 [#allocation3], 4
      %s27 = int_to_ptr.vmem [resolvable:$true] %s26
      %32 = dma.hbm_to_vmem [thread:$0]  %s0, 1024, %s27, [#allocation4], 128, 128, 8
    $region5: #{tpu_custom_call.1} parent=1 // pred_fallthru
      _
    // Predicated region
    $region6: #{tpu_custom_call.1} parent=1 // pred_check
      _
    $region7: #{tpu_custom_call.1} parent=1 // pred_check_branch
      %34 = sbr.rel (0) target = $region9
    $region8: #{tpu_custom_call.1} parent=1 // pred_region
      %s36 = ssub.s32 128, 128
      %37 = vsyncadd [#allocation7], %s36
      %s39 = sshll.u32 [#allocation6], 4
      %s40 = int_to_ptr.vmem [resolvable:$true] %s39
      %42 = dma.hbm_to_vmem [thread:$0]  %s1, 128, %s40, [#allocation7]
    $region9: #{tpu_custom_call.1} parent=1 // pred_fallthru
      _
    // Predicated region
    $region10: #{tpu_custom_call.1} parent=1 // pred_check
      _
    $region11: #{tpu_custom_call.1} parent=1 // pred_check_branch
      %44 = sbr.rel (0) target = $region13
    $region12: #{tpu_custom_call.1} parent=1 // pred_region
      %s46 = ssub.s32 2048, 2048
      %47 = vsyncadd [#allocation7], %s46
      %s48 = sshll.u32 [#allocation8], 4
      %s49 = int_to_ptr.vmem [resolvable:$true] %s48
      %54 = dma.hbm_to_vmem [thread:$0]  %s2, 2048, %s49, [#allocation7], 128, 128, 8
    $region13: #{tpu_custom_call.1} parent=1 // pred_fallthru
      _
    // Predicated region
    $region14: #{tpu_custom_call.1} parent=1 // pred_check
      _
    $region15: #{tpu_custom_call.1} parent=1 // pred_check_branch
      %56 = sbr.rel (0) target = $region17
    $region16: #{tpu_custom_call.1} parent=1 // pred_region
      _
    $region17: #{tpu_custom_call.1} parent=1 // pred_fallthru
      _
    // Predicated region
    $region18: #{tpu_custom_call.1} parent=1 // pred_check
      _
    $region19: #{tpu_custom_call.1} parent=1 // pred_check_branch
      %58 = sbr.rel (0) target = $region21
    $region20: #{tpu_custom_call.1} parent=1 // pred_region
      %s60 = ssub.s32 2048, 2048
      %61 = vsyncadd [#allocation10], %s60
      %s62 = sshll.u32 [#allocation9], 4
      %s63 = int_to_ptr.vmem [resolvable:$true] %s62
      %68 = dma.hbm_to_vmem [thread:$0]  %s4, 2048, %s63, [#allocation10], 128, 128, 8
    $region21: #{tpu_custom_call.1} parent=1 // pred_fallthru
      _
    // Predicated region
    $region22: #{tpu_custom_call.1} parent=1 // pred_check
      _
    $region23: #{tpu_custom_call.1} parent=1 // pred_check_branch
      %70 = sbr.rel (0) target = $region25
    $region24: #{tpu_custom_call.1} parent=1 // pred_region
      _
    $region25: #{tpu_custom_call.1} parent=1 // pred_fallthru
      _
    // Predicated region
    $region26: #{tpu_custom_call.1} parent=1 // pred_check
      _
    $region27: #{tpu_custom_call.1} parent=1 // pred_check_branch
      %72 = sbr.rel (0) target = $region29
    $region28: #{tpu_custom_call.1} parent=1 // pred_region
      %s74 = ssub.s32 2048, 2048
      %75 = vsyncadd [#allocation10], %s74
      %s76 = sshll.u32 [#allocation11], 4
      %s77 = int_to_ptr.vmem [resolvable:$true] %s76
      %82 = dma.hbm_to_vmem [thread:$0]  %s6, 2048, %s77, [#allocation10], 128, 128, 8
    $region29: #{tpu_custom_call.1} parent=1 // pred_fallthru
      _
    // Predicated region
    $region30: #{tpu_custom_call.1} parent=1 // pred_check
      _
    $region31: #{tpu_custom_call.1} parent=1 // pred_check_branch
      %84 = sbr.rel (0) target = $region33
    $region32: #{tpu_custom_call.1} parent=1 // pred_region
      _
    $region33: #{tpu_custom_call.1} parent=1 // pred_fallthru
      _
    // Predicated region
    $region34: #{tpu_custom_call.1} parent=1 // pred_check
      _
    $region35: #{tpu_custom_call.1} parent=1 // pred_check_branch
      %86 = sbr.rel (0) target = $region37
    $region36: #{tpu_custom_call.1} parent=1 // pred_region
      _
    $region37: #{tpu_custom_call.1} parent=1 // pred_fallthru
      _
    // Predicated region
    $region38: #{tpu_custom_call.1} parent=1 // pred_check
      _
    $region39: #{tpu_custom_call.1} parent=1 // pred_check_branch
      %88 = sbr.rel (0) target = $region41
    $region40: #{tpu_custom_call.1} parent=1 // pred_region
      _
    $region41: #{tpu_custom_call.1} parent=1 // pred_fallthru
      _
    // Predicated region
    $region42: #{tpu_custom_call.1} parent=1 // pred_check
      _
    $region43: #{tpu_custom_call.1} parent=1 // pred_check_branch
      %90 = sbr.rel (0) target = $region45
    $region44: #{tpu_custom_call.1} parent=1 // pred_region
      %91 = dma.done [#allocation4], 1024
    $region45: #{tpu_custom_call.1} parent=1 // pred_fallthru
      _
    // Predicated region
    $region46: #{tpu_custom_call.1} parent=1 // pred_check
      _
    $region47: #{tpu_custom_call.1} parent=1 // pred_check_branch
      %93 = sbr.rel (0) target = $region49
    $region48: #{tpu_custom_call.1} parent=1 // pred_region
      %94 = dma.done [#allocation7], 128
    $region49: #{tpu_custom_call.1} parent=1 // pred_fallthru
      _
    // Predicated region
    $region50: #{tpu_custom_call.1} parent=1 // pred_check
      _
    $region51: #{tpu_custom_call.1} parent=1 // pred_check_branch
      %96 = sbr.rel (0) target = $region53
    $region52: #{tpu_custom_call.1} parent=1 // pred_region
      %97 = dma.done [#allocation7], 2048
    $region53: #{tpu_custom_call.1} parent=1 // pred_fallthru
      _
    // Predicated region
    $region54: #{tpu_custom_call.1} parent=1 // pred_check
      _
    $region55: #{tpu_custom_call.1} parent=1 // pred_check_branch
      %99 = sbr.rel (0) target = $region57
    $region56: #{tpu_custom_call.1} parent=1 // pred_region
      %100 = dma.done [#allocation10], 2048
    $region57: #{tpu_custom_call.1} parent=1 // pred_fallthru
      _
    // Predicated region
    $region58: #{tpu_custom_call.1} parent=1 // pred_check
      _
    $region59: #{tpu_custom_call.1} parent=1 // pred_check_branch
      %102 = sbr.rel (0) target = $region61
    $region60: #{tpu_custom_call.1} parent=1 // pred_region
      %103 = dma.done [#allocation10], 2048
    $region61: #{tpu_custom_call.1} parent=1 // pred_fallthru
      _
    %v104 = vld [vmem:[#allocation3] sm:$0xff]
    %v105 = vld [vmem:[#allocation3 + $0x8] sm:$0xff]
    %v106 = vld [vmem:[#allocation3 + $0x10] sm:$0xff]
    %v107 = vld [vmem:[#allocation3 + $0x18] sm:$0xff]
    %v108 = vld [vmem:[#allocation3 + $0x20] sm:$0xff]
    %v109 = vld [vmem:[#allocation3 + $0x28] sm:$0xff]
    %v110 = vld [vmem:[#allocation3 + $0x30] sm:$0xff]
    %v111 = vld [vmem:[#allocation3 + $0x38] sm:$0xff]
    %v112 = vld [vmem:[#allocation8] sm:$0xff]
    %v113 = vld [vmem:[#allocation8 + $0x8] sm:$0xff]
    %v114 = vld [vmem:[#allocation8 + $0x10] sm:$0xff]
    %v115 = vld [vmem:[#allocation8 + $0x18] sm:$0xff]
    %v116 = vld [vmem:[#allocation8 + $0x20] sm:$0xff]
    %v117 = vld [vmem:[#allocation8 + $0x28] sm:$0xff]
    %v118 = vld [vmem:[#allocation8 + $0x30] sm:$0xff]
    %v119 = vld [vmem:[#allocation8 + $0x38] sm:$0xff]
    %v120 = vld [vmem:[#allocation8 + $0x40] sm:$0xff]
    %v121 = vld [vmem:[#allocation8 + $0x48] sm:$0xff]
    %v122 = vld [vmem:[#allocation8 + $0x50] sm:$0xff]
    %v123 = vld [vmem:[#allocation8 + $0x58] sm:$0xff]
    %v124 = vld [vmem:[#allocation8 + $0x60] sm:$0xff]
    %v125 = vld [vmem:[#allocation8 + $0x68] sm:$0xff]
    %v126 = vld [vmem:[#allocation8 + $0x70] sm:$0xff]
    %v127 = vld [vmem:[#allocation8 + $0x78] sm:$0xff]
    %v128 = vld [vmem:[%s3] sm:$0x1]
    %v130 = vlaneseq
    %v131 = vshrl.u32 %v130, 7
    %v132 = vsub.s32 0, %v131
    %v133 = vrot.slane %v128, %v132
    %135 = vmatprep.subr.mxu0 0.0
    %136 = vmatpush1.msra.mxu0 %v127
    %137 = vmatprep.subr.mxu0 0.0
    %138 = vmatpush1.msra.mxu0 %v126
    %139 = vmatprep.subr.mxu0 0.0
    %140 = vmatpush1.msra.mxu0 %v125
    %141 = vmatprep.subr.mxu0 0.0
    %142 = vmatpush1.msra.mxu0 %v124
    %143 = vmatprep.subr.mxu0 0.0
    %144 = vmatpush1.msra.mxu0 %v123
    %145 = vmatprep.subr.mxu0 0.0
    %146 = vmatpush1.msra.mxu0 %v122
    %147 = vmatprep.subr.mxu0 0.0
    %148 = vmatpush1.msra.mxu0 %v121
    %149 = vmatprep.subr.mxu0 0.0
    %150 = vmatpush1.msra.mxu0 %v120
    %151 = vmatprep.subr.mxu0 0.0
    %152 = vmatpush1.msra.mxu0 %v119
    %153 = vmatprep.subr.mxu0 0.0
    %154 = vmatpush1.msra.mxu0 %v118
    %155 = vmatprep.subr.mxu0 0.0
    %156 = vmatpush1.msra.mxu0 %v117
    %157 = vmatprep.subr.mxu0 0.0
    %158 = vmatpush1.msra.mxu0 %v116
    %159 = vmatprep.subr.mxu0 0.0
    %160 = vmatpush1.msra.mxu0 %v115
    %161 = vmatprep.subr.mxu0 0.0
    %162 = vmatpush1.msra.mxu0 %v114
    %163 = vmatprep.subr.mxu0 0.0
    %164 = vmatpush1.msra.mxu0 %v113
    %165 = vmatprep.subr.mxu0 0.0
    %166 = vmatpush1.msra.mxu0 %v112
    %167 = vmatprep.subr.mxu0 0.0
    %168 = vmatpush2.msra.mxu0 0.0
    %169 = vmatprep.subr.mxu0 0.0
    %170 = vmatpush2.msra.mxu0 0.0
    %171 = vmatprep.subr.mxu0 0.0
    %172 = vmatpush2.msra.mxu0 0.0
    %173 = vmatprep.subr.mxu0 0.0
    %174 = vmatpush2.msra.mxu0 0.0
    %175 = vmatprep.subr.mxu0 0.0
    %176 = vmatpush2.msra.mxu0 0.0
    %177 = vmatprep.subr.mxu0 0.0
    %178 = vmatpush2.msra.mxu0 0.0
    %179 = vmatprep.subr.mxu0 0.0
    %180 = vmatpush2.msra.mxu0 0.0
    %181 = vmatprep.subr.mxu0 0.0
    %182 = vmatpush2.msra.mxu0 0.0
    %183 = vmatprep.subr.mxu0 0.0
    %184 = vmatpush2.msra.mxu0 0.0
    %185 = vmatprep.subr.mxu0 0.0
    %186 = vmatpush2.msra.mxu0 0.0
    %187 = vmatprep.subr.mxu0 0.0
    %188 = vmatpush2.msra.mxu0 0.0
    %189 = vmatprep.subr.mxu0 0.0
    %190 = vmatpush2.msra.mxu0 0.0
    %191 = vmatprep.subr.mxu0 0.0
    %192 = vmatpush2.msra.mxu0 0.0
    %193 = vmatprep.subr.mxu0 0.0
    %194 = vmatpush2.msra.mxu0 0.0
    %195 = vmatprep.subr.mxu0 0.0
    %196 = vmatpush2.msra.mxu0 0.0
    %197 = vmatprep.subr.mxu0 0.0
    %198 = vmatpush2.msra.mxu0 0.0
    %199 = vmatprep.mubr.f32.mxu0 0.0
    %200 = vmatmul.mubr.f32.gmra.mxu0 %v104
    %v201 = vpop.f32.mrf.mxu0
    %v202 = vadd.f32 %v133, %v201
    %v203 = vpop.f32.mrf.mxu0
    %204 = vmatprep.mubr.f32.mxu0 0.0
    %205 = vmatmul.mubr.f32.gmra.mxu0 %v105
    %v206 = vpop.f32.mrf.mxu0
    %v207 = vadd.f32 %v133, %v206
    %v208 = vpop.f32.mrf.mxu0
    %209 = vmatprep.mubr.f32.mxu0 0.0
    %210 = vmatmul.mubr.f32.gmra.mxu0 %v106
    %v211 = vpop.f32.mrf.mxu0
    %v212 = vadd.f32 %v133, %v211
    %v213 = vpop.f32.mrf.mxu0
    %214 = vmatprep.mubr.f32.mxu0 0.0
    %215 = vmatmul.mubr.f32.gmra.mxu0 %v107
    %v216 = vpop.f32.mrf.mxu0
    %v217 = vadd.f32 %v133, %v216
    %v218 = vpop.f32.mrf.mxu0
    %219 = vmatprep.mubr.f32.mxu0 0.0
    %220 = vmatmul.mubr.f32.gmra.mxu0 %v108
    %v221 = vpop.f32.mrf.mxu0
    %v222 = vadd.f32 %v133, %v221
    %v223 = vpop.f32.mrf.mxu0
    %224 = vmatprep.mubr.f32.mxu0 0.0
    %225 = vmatmul.mubr.f32.gmra.mxu0 %v109
    %v226 = vpop.f32.mrf.mxu0
    %v227 = vadd.f32 %v133, %v226
    %v228 = vpop.f32.mrf.mxu0
    %229 = vmatprep.mubr.f32.mxu0 0.0
    %230 = vmatmul.mubr.f32.gmra.mxu0 %v110
    %v231 = vpop.f32.mrf.mxu0
    %v232 = vadd.f32 %v133, %v231
    %v233 = vpop.f32.mrf.mxu0
    %234 = vmatprep.mubr.f32.mxu0 0.0
    %235 = vmatmul.mubr.f32.gmra.mxu0 %v111
    %v236 = vpop.f32.mrf.mxu0
    %v237 = vadd.f32 %v133, %v236
    %v238 = vpop.f32.mrf.mxu0
    %239 = vdwg.mxu0
    %v240 = vmax.f32 %v202, 0.0
    %v241 = vmax.f32 %v207, 0.0
    %v242 = vmax.f32 %v212, 0.0
    %v243 = vmax.f32 %v217, 0.0
    %v244 = vmax.f32 %v222, 0.0
    %v245 = vmax.f32 %v227, 0.0
    %v246 = vmax.f32 %v232, 0.0
    %v247 = vmax.f32 %v237, 0.0
    %v248 = vld [vmem:[#allocation9] sm:$0xff]
    %v249 = vld [vmem:[#allocation9 + $0x8] sm:$0xff]
    %v250 = vld [vmem:[#allocation9 + $0x10] sm:$0xff]
    %v251 = vld [vmem:[#allocation9 + $0x18] sm:$0xff]
    %v252 = vld [vmem:[#allocation9 + $0x20] sm:$0xff]
    %v253 = vld [vmem:[#allocation9 + $0x28] sm:$0xff]
    %v254 = vld [vmem:[#allocation9 + $0x30] sm:$0xff]
    %v255 = vld [vmem:[#allocation9 + $0x38] sm:$0xff]
    %v256 = vld [vmem:[#allocation9 + $0x40] sm:$0xff]
    %v257 = vld [vmem:[#allocation9 + $0x48] sm:$0xff]
    %v258 = vld [vmem:[#allocation9 + $0x50] sm:$0xff]
    %v259 = vld [vmem:[#allocation9 + $0x58] sm:$0xff]
    %v260 = vld [vmem:[#allocation9 + $0x60] sm:$0xff]
    %v261 = vld [vmem:[#allocation9 + $0x68] sm:$0xff]
    %v262 = vld [vmem:[#allocation9 + $0x70] sm:$0xff]
    %v263 = vld [vmem:[#allocation9 + $0x78] sm:$0xff]
    %v264 = vld [vmem:[%s5] sm:$0x1]
    %v266 = vlaneseq
    %v267 = vshrl.u32 %v266, 7
    %v268 = vsub.s32 0, %v267
    %v269 = vrot.slane %v264, %v268
    %271 = vmatprep.subr.mxu0 0.0
    %272 = vmatpush1.msra.mxu0 %v263
    %273 = vmatprep.subr.mxu0 0.0
    %274 = vmatpush1.msra.mxu0 %v262
    %275 = vmatprep.subr.mxu0 0.0
    %276 = vmatpush1.msra.mxu0 %v261
    %277 = vmatprep.subr.mxu0 0.0
    %278 = vmatpush1.msra.mxu0 %v260
    %279 = vmatprep.subr.mxu0 0.0
    %280 = vmatpush1.msra.mxu0 %v259
    %281 = vmatprep.subr.mxu0 0.0
    %282 = vmatpush1.msra.mxu0 %v258
    %283 = vmatprep.subr.mxu0 0.0
    %284 = vmatpush1.msra.mxu0 %v257
    %285 = vmatprep.subr.mxu0 0.0
    %286 = vmatpush1.msra.mxu0 %v256
    %287 = vmatprep.subr.mxu0 0.0
    %288 = vmatpush1.msra.mxu0 %v255
    %289 = vmatprep.subr.mxu0 0.0
    %290 = vmatpush1.msra.mxu0 %v254
    %291 = vmatprep.subr.mxu0 0.0
    %292 = vmatpush1.msra.mxu0 %v253
    %293 = vmatprep.subr.mxu0 0.0
    %294 = vmatpush1.msra.mxu0 %v252
    %295 = vmatprep.subr.mxu0 0.0
    %296 = vmatpush1.msra.mxu0 %v251
    %297 = vmatprep.subr.mxu0 0.0
    %298 = vmatpush1.msra.mxu0 %v250
    %299 = vmatprep.subr.mxu0 0.0
    %300 = vmatpush1.msra.mxu0 %v249
    %301 = vmatprep.subr.mxu0 0.0
    %302 = vmatpush1.msra.mxu0 %v248
    %303 = vmatprep.subr.mxu0 0.0
    %304 = vmatpush2.msra.mxu0 0.0
    %305 = vmatprep.subr.mxu0 0.0
    %306 = vmatpush2.msra.mxu0 0.0
    %307 = vmatprep.subr.mxu0 0.0
    %308 = vmatpush2.msra.mxu0 0.0
    %309 = vmatprep.subr.mxu0 0.0
    %310 = vmatpush2.msra.mxu0 0.0
    %311 = vmatprep.subr.mxu0 0.0
    %312 = vmatpush2.msra.mxu0 0.0
    %313 = vmatprep.subr.mxu0 0.0
    %314 = vmatpush2.msra.mxu0 0.0
    %315 = vmatprep.subr.mxu0 0.0
    %316 = vmatpush2.msra.mxu0 0.0
    %317 = vmatprep.subr.mxu0 0.0
    %318 = vmatpush2.msra.mxu0 0.0
    %319 = vmatprep.subr.mxu0 0.0
    %320 = vmatpush2.msra.mxu0 0.0
    %321 = vmatprep.subr.mxu0 0.0
    %322 = vmatpush2.msra.mxu0 0.0
    %323 = vmatprep.subr.mxu0 0.0
    %324 = vmatpush2.msra.mxu0 0.0
    %325 = vmatprep.subr.mxu0 0.0
    %326 = vmatpush2.msra.mxu0 0.0
    %327 = vmatprep.subr.mxu0 0.0
    %328 = vmatpush2.msra.mxu0 0.0
    %329 = vmatprep.subr.mxu0 0.0
    %330 = vmatpush2.msra.mxu0 0.0
    %331 = vmatprep.subr.mxu0 0.0
    %332 = vmatpush2.msra.mxu0 0.0
    %333 = vmatprep.subr.mxu0 0.0
    %334 = vmatpush2.msra.mxu0 0.0
    %335 = vmatprep.mubr.f32.mxu0 0.0
    %336 = vmatmul.mubr.f32.gmra.mxu0 %v240
    %v337 = vpop.f32.mrf.mxu0
    %v338 = vadd.f32 %v269, %v337
    %v339 = vpop.f32.mrf.mxu0
    %340 = vmatprep.mubr.f32.mxu0 0.0
    %341 = vmatmul.mubr.f32.gmra.mxu0 %v241
    %v342 = vpop.f32.mrf.mxu0
    %v343 = vadd.f32 %v269, %v342
    %v344 = vpop.f32.mrf.mxu0
    %345 = vmatprep.mubr.f32.mxu0 0.0
    %346 = vmatmul.mubr.f32.gmra.mxu0 %v242
    %v347 = vpop.f32.mrf.mxu0
    %v348 = vadd.f32 %v269, %v347
    %v349 = vpop.f32.mrf.mxu0
    %350 = vmatprep.mubr.f32.mxu0 0.0
    %351 = vmatmul.mubr.f32.gmra.mxu0 %v243
    %v352 = vpop.f32.mrf.mxu0
    %v353 = vadd.f32 %v269, %v352
    %v354 = vpop.f32.mrf.mxu0
    %355 = vmatprep.mubr.f32.mxu0 0.0
    %356 = vmatmul.mubr.f32.gmra.mxu0 %v244
    %v357 = vpop.f32.mrf.mxu0
    %v358 = vadd.f32 %v269, %v357
    %v359 = vpop.f32.mrf.mxu0
    %360 = vmatprep.mubr.f32.mxu0 0.0
    %361 = vmatmul.mubr.f32.gmra.mxu0 %v245
    %v362 = vpop.f32.mrf.mxu0
    %v363 = vadd.f32 %v269, %v362
    %v364 = vpop.f32.mrf.mxu0
    %365 = vmatprep.mubr.f32.mxu0 0.0
    %366 = vmatmul.mubr.f32.gmra.mxu0 %v246
    %v367 = vpop.f32.mrf.mxu0
    %v368 = vadd.f32 %v269, %v367
    %v369 = vpop.f32.mrf.mxu0
    %370 = vmatprep.mubr.f32.mxu0 0.0
    %371 = vmatmul.mubr.f32.gmra.mxu0 %v247
    %v372 = vpop.f32.mrf.mxu0
    %v373 = vadd.f32 %v269, %v372
    %v374 = vpop.f32.mrf.mxu0
    %375 = vdwg.mxu0
    %v376 = vmax.f32 %v338, 0.0
    %v377 = vmax.f32 %v343, 0.0
    %v378 = vmax.f32 %v348, 0.0
    %v379 = vmax.f32 %v353, 0.0
    %v380 = vmax.f32 %v358, 0.0
    %v381 = vmax.f32 %v363, 0.0
    %v382 = vmax.f32 %v368, 0.0
    %v383 = vmax.f32 %v373, 0.0
    %v384 = vld [vmem:[#allocation11] sm:$0xff]
    %v385 = vld [vmem:[#allocation11 + $0x8] sm:$0xff]
    %v386 = vld [vmem:[#allocation11 + $0x10] sm:$0xff]
    %v387 = vld [vmem:[#allocation11 + $0x18] sm:$0xff]
    %v388 = vld [vmem:[#allocation11 + $0x20] sm:$0xff]
    %v389 = vld [vmem:[#allocation11 + $0x28] sm:$0xff]
    %v390 = vld [vmem:[#allocation11 + $0x30] sm:$0xff]
    %v391 = vld [vmem:[#allocation11 + $0x38] sm:$0xff]
    %v392 = vld [vmem:[#allocation11 + $0x40] sm:$0xff]
    %v393 = vld [vmem:[#allocation11 + $0x48] sm:$0xff]
    %v394 = vld [vmem:[#allocation11 + $0x50] sm:$0xff]
    %v395 = vld [vmem:[#allocation11 + $0x58] sm:$0xff]
    %v396 = vld [vmem:[#allocation11 + $0x60] sm:$0xff]
    %v397 = vld [vmem:[#allocation11 + $0x68] sm:$0xff]
    %v398 = vld [vmem:[#allocation11 + $0x70] sm:$0xff]
    %v399 = vld [vmem:[#allocation11 + $0x78] sm:$0xff]
    %v400 = vld [vmem:[%s7] sm:$0x1]
    %v402 = vlaneseq
    %v403 = vshrl.u32 %v402, 7
    %v404 = vsub.s32 0, %v403
    %v405 = vrot.slane %v400, %v404
    %407 = vmatprep.subr.mxu0 0.0
    %408 = vmatpush1.msra.mxu0 %v399
    %409 = vmatprep.subr.mxu0 0.0
    %410 = vmatpush1.msra.mxu0 %v398
    %411 = vmatprep.subr.mxu0 0.0
    %412 = vmatpush1.msra.mxu0 %v397
    %413 = vmatprep.subr.mxu0 0.0
    %414 = vmatpush1.msra.mxu0 %v396
    %415 = vmatprep.subr.mxu0 0.0
    %416 = vmatpush1.msra.mxu0 %v395
    %417 = vmatprep.subr.mxu0 0.0
    %418 = vmatpush1.msra.mxu0 %v394
    %419 = vmatprep.subr.mxu0 0.0
    %420 = vmatpush1.msra.mxu0 %v393
    %421 = vmatprep.subr.mxu0 0.0
    %422 = vmatpush1.msra.mxu0 %v392
    %423 = vmatprep.subr.mxu0 0.0
    %424 = vmatpush1.msra.mxu0 %v391
    %425 = vmatprep.subr.mxu0 0.0
    %426 = vmatpush1.msra.mxu0 %v390
    %427 = vmatprep.subr.mxu0 0.0
    %428 = vmatpush1.msra.mxu0 %v389
    %429 = vmatprep.subr.mxu0 0.0
    %430 = vmatpush1.msra.mxu0 %v388
    %431 = vmatprep.subr.mxu0 0.0
    %432 = vmatpush1.msra.mxu0 %v387
    %433 = vmatprep.subr.mxu0 0.0
    %434 = vmatpush1.msra.mxu0 %v386
    %435 = vmatprep.subr.mxu0 0.0
    %436 = vmatpush1.msra.mxu0 %v385
    %437 = vmatprep.subr.mxu0 0.0
    %438 = vmatpush1.msra.mxu0 %v384
    %439 = vmatprep.subr.mxu0 0.0
    %440 = vmatpush2.msra.mxu0 0.0
    %441 = vmatprep.subr.mxu0 0.0
    %442 = vmatpush2.msra.mxu0 0.0
    %443 = vmatprep.subr.mxu0 0.0
    %444 = vmatpush2.msra.mxu0 0.0
    %445 = vmatprep.subr.mxu0 0.0
    %446 = vmatpush2.msra.mxu0 0.0
    %447 = vmatprep.subr.mxu0 0.0
    %448 = vmatpush2.msra.mxu0 0.0
    %449 = vmatprep.subr.mxu0 0.0
    %450 = vmatpush2.msra.mxu0 0.0
    %451 = vmatprep.subr.mxu0 0.0
    %452 = vmatpush2.msra.mxu0 0.0
    %453 = vmatprep.subr.mxu0 0.0
    %454 = vmatpush2.msra.mxu0 0.0
    %455 = vmatprep.subr.mxu0 0.0
    %456 = vmatpush2.msra.mxu0 0.0
    %457 = vmatprep.subr.mxu0 0.0
    %458 = vmatpush2.msra.mxu0 0.0
    %459 = vmatprep.subr.mxu0 0.0
    %460 = vmatpush2.msra.mxu0 0.0
    %461 = vmatprep.subr.mxu0 0.0
    %462 = vmatpush2.msra.mxu0 0.0
    %463 = vmatprep.subr.mxu0 0.0
    %464 = vmatpush2.msra.mxu0 0.0
    %465 = vmatprep.subr.mxu0 0.0
    %466 = vmatpush2.msra.mxu0 0.0
    %467 = vmatprep.subr.mxu0 0.0
    %468 = vmatpush2.msra.mxu0 0.0
    %469 = vmatprep.subr.mxu0 0.0
    %470 = vmatpush2.msra.mxu0 0.0
    %471 = vmatprep.mubr.f32.mxu0 0.0
    %472 = vmatmul.mubr.f32.gmra.mxu0 %v376
    %v473 = vpop.f32.mrf.mxu0
    %v474 = vadd.f32 %v405, %v473
    %v475 = vpop.f32.mrf.mxu0
    %476 = vmatprep.mubr.f32.mxu0 0.0
    %477 = vmatmul.mubr.f32.gmra.mxu0 %v377
    %v478 = vpop.f32.mrf.mxu0
    %v479 = vadd.f32 %v405, %v478
    %v480 = vpop.f32.mrf.mxu0
    %481 = vmatprep.mubr.f32.mxu0 0.0
    %482 = vmatmul.mubr.f32.gmra.mxu0 %v378
    %v483 = vpop.f32.mrf.mxu0
    %v484 = vadd.f32 %v405, %v483
    %v485 = vpop.f32.mrf.mxu0
    %486 = vmatprep.mubr.f32.mxu0 0.0
    %487 = vmatmul.mubr.f32.gmra.mxu0 %v379
    %v488 = vpop.f32.mrf.mxu0
    %v489 = vadd.f32 %v405, %v488
    %v490 = vpop.f32.mrf.mxu0
    %491 = vmatprep.mubr.f32.mxu0 0.0
    %492 = vmatmul.mubr.f32.gmra.mxu0 %v380
    %v493 = vpop.f32.mrf.mxu0
    %v494 = vadd.f32 %v405, %v493
    %v495 = vpop.f32.mrf.mxu0
    %496 = vmatprep.mubr.f32.mxu0 0.0
    %497 = vmatmul.mubr.f32.gmra.mxu0 %v381
    %v498 = vpop.f32.mrf.mxu0
    %v499 = vadd.f32 %v405, %v498
    %v500 = vpop.f32.mrf.mxu0
    %501 = vmatprep.mubr.f32.mxu0 0.0
    %502 = vmatmul.mubr.f32.gmra.mxu0 %v382
    %v503 = vpop.f32.mrf.mxu0
    %v504 = vadd.f32 %v405, %v503
    %v505 = vpop.f32.mrf.mxu0
    %506 = vmatprep.mubr.f32.mxu0 0.0
    %507 = vmatmul.mubr.f32.gmra.mxu0 %v383
    %v508 = vpop.f32.mrf.mxu0
    %v509 = vadd.f32 %v405, %v508
    %v510 = vpop.f32.mrf.mxu0
    %511 = vdwg.mxu0
    %v512 = vmax.f32 %v474, 0.0
    %v513 = vmax.f32 %v479, 0.0
    %v514 = vmax.f32 %v484, 0.0
    %v515 = vmax.f32 %v489, 0.0
    %v516 = vmax.f32 %v494, 0.0
    %v517 = vmax.f32 %v499, 0.0
    %v518 = vmax.f32 %v504, 0.0
    %v519 = vmax.f32 %v509, 0.0
    %v520 = vld [vmem:[%s8] sm:$0x1]
    %v522 = vlaneseq
    %v523 = vshrl.u32 %v522, 7
    %v524 = vsub.s32 0, %v523
    %v525 = vrot.slane %v520, %v524
    %v527 = vmul.f32 %v512, %v525
    %v528 = vmul.f32 %v513, %v525
    %v529 = vmul.f32 %v514, %v525
    %v530 = vmul.f32 %v515, %v525
    %v531 = vmul.f32 %v516, %v525
    %v532 = vmul.f32 %v517, %v525
    %v533 = vmul.f32 %v518, %v525
    %v534 = vmul.f32 %v519, %v525
    %535 = vadd.xlane.f32.xlu0 %v527
    %v536 = vpop.xlane.xlu0 %535
    %537 = vadd.xlane.f32.xlu0 %v528
    %v538 = vpop.xlane.xlu0 %537
    %539 = vadd.xlane.f32.xlu0 %v529
    %v540 = vpop.xlane.xlu0 %539
    %541 = vadd.xlane.f32.xlu0 %v530
    %v542 = vpop.xlane.xlu0 %541
    %543 = vadd.xlane.f32.xlu0 %v531
    %v544 = vpop.xlane.xlu0 %543
    %545 = vadd.xlane.f32.xlu0 %v532
    %v546 = vpop.xlane.xlu0 %545
    %547 = vadd.xlane.f32.xlu0 %v533
    %v548 = vpop.xlane.xlu0 %547
    %549 = vadd.xlane.f32.xlu0 %v534
    %v550 = vpop.xlane.xlu0 %549
    %v551 = vld [vmem:[#allocation2] sm:$0x1]
    %v553 = vlaneseq
    %v554 = vshrl.u32 %v553, 7
    %v555 = vsub.s32 0, %v554
    %v556 = vrot.slane %v551, %v555
    %557 = vset.pattern.permute.xlu0 0
    %558 = vperm.xlu0 %557, %v556
    %v559 = vpop.permute.xlu0 %558
    %v561 = vadd.f32 %v536, %v559
    %v562 = vadd.f32 %v538, %v559
    %v563 = vadd.f32 %v540, %v559
    %v564 = vadd.f32 %v542, %v559
    %v565 = vadd.f32 %v544, %v559
    %v566 = vadd.f32 %v546, %v559
    %v567 = vadd.f32 %v548, %v559
    %v568 = vadd.f32 %v550, %v559
    %v569 = vld [vmem:[#allocation6] sm:$0xff]
    %v571 = vlaneseq
    %v572 = vshrl.u32 %v571, 7
    %v573 = vsub.s32 0, %v572
    %v574 = vrot.slane %v569, %v573
    %576 = vbcast.lane.b32.xlu0 %v574, 256
    %v577 = vpop.permute.xlu0 %576
    %v578 = vlaneseq
    %v579 = vshrl.u32 %v578, 7
    %v580 = vsub.s32 1, %v579
    %v581 = vrot.slane %v569, %v580
    %583 = vbcast.lane.b32.xlu0 %v581, 256
    %v584 = vpop.permute.xlu0 %583
    %v585 = vlaneseq
    %v586 = vshrl.u32 %v585, 7
    %v587 = vsub.s32 2, %v586
    %v588 = vrot.slane %v569, %v587
    %590 = vbcast.lane.b32.xlu0 %v588, 256
    %v591 = vpop.permute.xlu0 %590
    %v592 = vlaneseq
    %v593 = vshrl.u32 %v592, 7
    %v594 = vsub.s32 3, %v593
    %v595 = vrot.slane %v569, %v594
    %597 = vbcast.lane.b32.xlu0 %v595, 256
    %v598 = vpop.permute.xlu0 %597
    %v599 = vlaneseq
    %v600 = vshrl.u32 %v599, 7
    %v601 = vsub.s32 4, %v600
    %v602 = vrot.slane %v569, %v601
    %604 = vbcast.lane.b32.xlu0 %v602, 256
    %v605 = vpop.permute.xlu0 %604
    %v606 = vlaneseq
    %v607 = vshrl.u32 %v606, 7
    %v608 = vsub.s32 5, %v607
    %v609 = vrot.slane %v569, %v608
    %611 = vbcast.lane.b32.xlu0 %v609, 256
    %v612 = vpop.permute.xlu0 %611
    %v613 = vlaneseq
    %v614 = vshrl.u32 %v613, 7
    %v615 = vsub.s32 6, %v614
    %v616 = vrot.slane %v569, %v615
    %618 = vbcast.lane.b32.xlu0 %v616, 256
    %v619 = vpop.permute.xlu0 %618
    %v620 = vlaneseq
    %v621 = vshrl.u32 %v620, 7
    %v622 = vsub.s32 7, %v621
    %v623 = vrot.slane %v569, %v622
    %625 = vbcast.lane.b32.xlu0 %v623, 256
    %v626 = vpop.permute.xlu0 %625
    %v635 = vmul.f32 %v561, %v577
    %v636 = vmul.f32 %v562, %v584
    %v637 = vmul.f32 %v563, %v591
    %v638 = vmul.f32 %v564, %v598
    %v639 = vmul.f32 %v565, %v605
    %v640 = vmul.f32 %v566, %v612
    %v641 = vmul.f32 %v567, %v619
    %v642 = vmul.f32 %v568, %v626
    %651 = vset.pattern.permute.xlu0 0
    %652 = vperm.xlu0 %651, %v635
    %v653 = vpop.permute.xlu0 %652
    %654 = vset.pattern.permute.xlu0 0
    %655 = vperm.xlu0 %654, %v636
    %v656 = vpop.permute.xlu0 %655
    %657 = vset.pattern.permute.xlu0 0
    %658 = vperm.xlu0 %657, %v637
    %v659 = vpop.permute.xlu0 %658
    %660 = vset.pattern.permute.xlu0 0
    %661 = vperm.xlu0 %660, %v638
    %v662 = vpop.permute.xlu0 %661
    %663 = vset.pattern.permute.xlu0 0
    %664 = vperm.xlu0 %663, %v639
    %v665 = vpop.permute.xlu0 %664
    %666 = vset.pattern.permute.xlu0 0
    %667 = vperm.xlu0 %666, %v640
    %v668 = vpop.permute.xlu0 %667
    %669 = vset.pattern.permute.xlu0 0
    %670 = vperm.xlu0 %669, %v641
    %v671 = vpop.permute.xlu0 %670
    %672 = vset.pattern.permute.xlu0 0
    %673 = vperm.xlu0 %672, %v642
    %v674 = vpop.permute.xlu0 %673
    %v675 = vlaneseq
    %v676 = vand.u32 %v675, 127
    %v677 = vlaneseq
    %v678 = vshrl.u32 %v677, 7
    %v679 = vsub.s32 %v676, %v678
    %v680 = vrot.slane %v653, %v679
    %v681 = vlaneseq
    %v682 = vshrl.u32 %v681, 7
    %v683 = vsub.s32 %v676, %v682
    %v684 = vrot.slane %v656, %v683
    %v685 = vlaneseq
    %v686 = vshrl.u32 %v685, 7
    %v687 = vsub.s32 %v676, %v686
    %v688 = vrot.slane %v659, %v687
    %v689 = vlaneseq
    %v690 = vshrl.u32 %v689, 7
    %v691 = vsub.s32 %v676, %v690
    %v692 = vrot.slane %v662, %v691
    %v693 = vlaneseq
    %v694 = vshrl.u32 %v693, 7
    %v695 = vsub.s32 %v676, %v694
    %v696 = vrot.slane %v665, %v695
    %v697 = vlaneseq
    %v698 = vshrl.u32 %v697, 7
    %v699 = vsub.s32 %v676, %v698
    %v700 = vrot.slane %v668, %v699
    %v701 = vlaneseq
    %v702 = vshrl.u32 %v701, 7
    %v703 = vsub.s32 %v676, %v702
    %v704 = vrot.slane %v671, %v703
    %v705 = vlaneseq
    %v706 = vshrl.u32 %v705, 7
    %v707 = vsub.s32 %v676, %v706
    %v708 = vrot.slane %v674, %v707
    %vm709 = vcmask 1041409
    %v710 = vsel %vm709, %v684, %v680
    %vm711 = vcmask 1042434
    %v712 = vsel %vm711, %v688, %v710
    %vm713 = vcmask 1043459
    %v714 = vsel %vm713, %v692, %v712
    %vm715 = vcmask 1044484
    %v716 = vsel %vm715, %v696, %v714
    %vm717 = vcmask 1045509
    %v718 = vsel %vm717, %v700, %v716
    %vm719 = vcmask 1046534
    %v720 = vsel %vm719, %v704, %v718
    %vm721 = vcmask 1047559
    %v722 = vsel %vm721, %v708, %v720
    %vm724 = vcmask 64512
    %v725 = vsel %vm724, %v722, 0.0
    %726 = vadd.xlane.f32.xlu0 %v725
    %v727 = vpop.xlane.xlu0 %726
    %v729 = vlaneseq
    %v730 = vshrl.u32 %v729, 7
    %v731 = vsub.s32 %v676, %v730
    %v732 = vrot.slane %v727, %v731
    %vm734 = vcmask 57344
    %735 = vst.msk [vmem:[#allocation12] sm:$0x1] %vm734, %v732
    // Predicated region
    $region62: #{tpu_custom_call.1} parent=1 // pred_check
      _
    $region63: #{tpu_custom_call.1} parent=1 // pred_check_branch
      %737 = sbr.rel (0) target = $region65
    $region64: #{tpu_custom_call.1} parent=1 // pred_region
      %s739 = ssub.s32 16, 16
      %740 = vsyncadd [#allocation5], %s739
      %s742 = sshll.u32 [#allocation12], 4
      %s743 = int_to_ptr.vmem [resolvable:$true] %s742
      %745 = dma.vmem_to_hbm [thread:$0]  %s743, 16, %s10, [#allocation5]
    $region65: #{tpu_custom_call.1} parent=1 // pred_fallthru
      _
    // Predicated region
    $region66: #{tpu_custom_call.1} parent=1 // pred_check
      _
    $region67: #{tpu_custom_call.1} parent=1 // pred_check_branch
      %747 = sbr.rel (0) target = $region69
    $region68: #{tpu_custom_call.1} parent=1 // pred_region
      %748 = dma.done [#allocation5], 16
    $region69: #{tpu_custom_call.1} parent=1 // pred_fallthru
      _
    %749 = vsyncpa [#allocation4], 1
    %750 = vsyncpa [#allocation7], 1
    %751 = vsyncpa [#allocation10], 1
    %752 = vsyncpa [#allocation5], 1

// kernel: tpu_custom_call.1
$region0: #{tpu_custom_call.1}
  #allocation0 [shape = 'u32[]', space=smem, size = 0x4, offset = 0x4, fixed_abs, tag = 'smem constant byte address 0x4 - core index']
  #allocation1 [shape = 'u32[144,128]{1,0:T(1,128)}', space=vmem, size = 0x12000, scoped, tag = 'internal scratch']
  #allocation2 [shape = 'f32[1,1]{1,0:T(1,128)S(1)}', space=vmem, size = 0x200, scoped, tag = 'scoped memory for tpu_custom_call.1']
  %s0 = inlined_call_operand.hbm [shape: f32[64,128], index: 0, kind: input, shape index: {}]
  %s1 = inlined_call_operand.hbm [shape: f32[8,8], index: 1, kind: input, shape index: {}]
  %s2 = inlined_call_operand.hbm [shape: f32[128,128], index: 2, kind: input, shape index: {}]
  %s3 = inlined_call_operand.vmem [shape: f32[1,128], index: 3, kind: input, shape index: {}]
  %s4 = inlined_call_operand.hbm [shape: f32[128,128], index: 4, kind: input, shape index: {}]
  %s5 = inlined_call_operand.vmem [shape: f32[1,128], index: 5, kind: input, shape index: {}]
  %s6 = inlined_call_operand.hbm [shape: f32[128,128], index: 6, kind: input, shape index: {}]
  %s7 = inlined_call_operand.vmem [shape: f32[1,128], index: 7, kind: input, shape index: {}]
  %s8 = inlined_call_operand.vmem [shape: f32[1,128], index: 8, kind: input, shape index: {}]
  %s9 = inlined_call_operand.<no memory space> [shape: f32[1,1], index: 9, kind: input, shape index: {}]
  %s10 = inlined_call_operand.hbm [shape: f32[1,1,8], index: 10, kind: output, shape index: {}]
  %s11 = sld [smem:[#allocation0]]
  $region70: #{tpu_custom_call.1} parent=0
    _
  %s13 = ssub.s32 1, %s11
  %s14 = scalar_select 0, %s13, %s11
  %v15 = vstv %s9
  %16 = vst [vmem:[#allocation2] sm:$0x1] %v15
  $region1: #{tpu_custom_call.1} parent=0
    #allocation3 [shape = 'u8[32768]{0}', space=vmem, size = 0x8000, scoped, tag = 'input window, operand 0, single buffered']
    #allocation4 [shape = 's32[1]{0}', space=sflag, size = 0x4, scoped, tag = 'scoped memory for tpu_custom_call.1']
    #allocation5 [shape = 's32[1]{0}', space=sflag, size = 0x4, scoped, tag = 'scoped memory for tpu_custom_call.1']
    #allocation6 [shape = 'u8[4096]{0}', space=vmem, size = 0x1000, scoped, tag = 'input window, operand 1, single buffered']
    #allocation7 [shape = 's32[1]{0}', space=sflag, size = 0x4, scoped, tag = 'scoped memory for tpu_custom_call.1']
    #allocation8 [shape = 'u8[65536]{0}', space=vmem, size = 0x10000, scoped, tag = 'input window, operand 2, single buffered']
    #allocation9 [shape = 'u8[65536]{0}', space=vmem, size = 0x10000, scoped, tag = 'input window, operand 4, single buffered']
    #allocation10 [shape = 's32[1]{0}', space=sflag, size = 0x4, scoped, tag = 'scoped memory for tpu_custom_call.1']
    #allocation11 [shape = 'u8[65536]{0}', space=vmem, size = 0x10000, scoped, tag = 'input window, operand 6, single buffered']
    #allocation12 [shape = 'u8[512]{0}', space=vmem, size = 0x400, scoped, tag = 'output window, operand 0, single buffered']
    %17 = vsyncpa [#allocation4], 0
    %18 = vsyncpa [#allocation7], 0
    %19 = vsyncpa [#allocation10], 0
    %20 = vsyncpa [#allocation5], 0
    // Predicated region
    $region2: #{tpu_custom_call.1} parent=1 // pred_check
      _
    $region3: #{tpu_custom_call.1} parent=1 // pred_check_branch
      %22 = sbr.rel (0) target = $region5
    $region4: #{tpu_custom_call.1} parent=1 // pred_region
      %s24 = ssub.s32 1024, 1024
      %25 = vsyncadd [#allocation4], %s24
      %s26 = sshll.u32 [#allocation3], 4
      %s27 = int_to_ptr.vmem [resolvable:$true] %s26
      %32 = dma.hbm_to_vmem [thread:$0]  %s0, 1024, %s27, [#allocation4], 128, 128, 8
    $region5: #{tpu_custom_call.1} parent=1 // pred_fallthru
      _
    // Predicated region
    $region6: #{tpu_custom_call.1} parent=1 // pred_check
      _
    $region7: #{tpu_custom_call.1} parent=1 // pred_check_branch
      %34 = sbr.rel (0) target = $region9
    $region8: #{tpu_custom_call.1} parent=1 // pred_region
      %s36 = ssub.s32 128, 128
      %37 = vsyncadd [#allocation7], %s36
      %s39 = sshll.u32 [#allocation6], 4
      %s40 = int_to_ptr.vmem [resolvable:$true] %s39
      %42 = dma.hbm_to_vmem [thread:$0]  %s1, 128, %s40, [#allocation7]
    $region9: #{tpu_custom_call.1} parent=1 // pred_fallthru
      _
    // Predicated region
    $region10: #{tpu_custom_call.1} parent=1 // pred_check
      _
    $region11: #{tpu_custom_call.1} parent=1 // pred_check_branch
      %44 = sbr.rel (0) target = $region13
    $region12: #{tpu_custom_call.1} parent=1 // pred_region
      %s46 = ssub.s32 2048, 2048
      %47 = vsyncadd [#allocation7], %s46
      %s48 = sshll.u32 [#allocation8], 4
      %s49 = int_to_ptr.vmem [resolvable:$true] %s48
      %54 = dma.hbm_to_vmem [thread:$0]  %s2, 2048, %s49, [#allocation7], 128, 128, 8
    $region13: #{tpu_custom_call.1} parent=1 // pred_fallthru
      _
    // Predicated region
    $region14: #{tpu_custom_call.1} parent=1 // pred_check
      _
    $region15: #{tpu_custom_call.1} parent=1 // pred_check_branch
      %56 = sbr.rel (0) target = $region17
    $region16: #{tpu_custom_call.1} parent=1 // pred_region
      _
    $region17: #{tpu_custom_call.1} parent=1 // pred_fallthru
      _
    // Predicated region
    $region18: #{tpu_custom_call.1} parent=1 // pred_check
      _
    $region19: #{tpu_custom_call.1} parent=1 // pred_check_branch
      %58 = sbr.rel (0) target = $region21
    $region20: #{tpu_custom_call.1} parent=1 // pred_region
      %s60 = ssub.s32 2048, 2048
      %61 = vsyncadd [#allocation10], %s60
      %s62 = sshll.u32 [#allocation9], 4
      %s63 = int_to_ptr.vmem [resolvable:$true] %s62
      %68 = dma.hbm_to_vmem [thread:$0]  %s4, 2048, %s63, [#allocation10], 128, 128, 8
    $region21: #{tpu_custom_call.1} parent=1 // pred_fallthru
      _
    // Predicated region
    $region22: #{tpu_custom_call.1} parent=1 // pred_check
      _
    $region23: #{tpu_custom_call.1} parent=1 // pred_check_branch
      %70 = sbr.rel (0) target = $region25
    $region24: #{tpu_custom_call.1} parent=1 // pred_region
      _
    $region25: #{tpu_custom_call.1} parent=1 // pred_fallthru
      _
    // Predicated region
    $region26: #{tpu_custom_call.1} parent=1 // pred_check
      _
    $region27: #{tpu_custom_call.1} parent=1 // pred_check_branch
      %72 = sbr.rel (0) target = $region29
    $region28: #{tpu_custom_call.1} parent=1 // pred_region
      %s74 = ssub.s32 2048, 2048
      %75 = vsyncadd [#allocation10], %s74
      %s76 = sshll.u32 [#allocation11], 4
      %s77 = int_to_ptr.vmem [resolvable:$true] %s76
      %82 = dma.hbm_to_vmem [thread:$0]  %s6, 2048, %s77, [#allocation10], 128, 128, 8
    $region29: #{tpu_custom_call.1} parent=1 // pred_fallthru
      _
    // Predicated region
    $region30: #{tpu_custom_call.1} parent=1 // pred_check
      _
    $region31: #{tpu_custom_call.1} parent=1 // pred_check_branch
      %84 = sbr.rel (0) target = $region33
    $region32: #{tpu_custom_call.1} parent=1 // pred_region
      _
    $region33: #{tpu_custom_call.1} parent=1 // pred_fallthru
      _
    // Predicated region
    $region34: #{tpu_custom_call.1} parent=1 // pred_check
      _
    $region35: #{tpu_custom_call.1} parent=1 // pred_check_branch
      %86 = sbr.rel (0) target = $region37
    $region36: #{tpu_custom_call.1} parent=1 // pred_region
      _
    $region37: #{tpu_custom_call.1} parent=1 // pred_fallthru
      _
    // Predicated region
    $region38: #{tpu_custom_call.1} parent=1 // pred_check
      _
    $region39: #{tpu_custom_call.1} parent=1 // pred_check_branch
      %88 = sbr.rel (0) target = $region41
    $region40: #{tpu_custom_call.1} parent=1 // pred_region
      _
    $region41: #{tpu_custom_call.1} parent=1 // pred_fallthru
      _
    // Predicated region
    $region42: #{tpu_custom_call.1} parent=1 // pred_check
      _
    $region43: #{tpu_custom_call.1} parent=1 // pred_check_branch
      %90 = sbr.rel (0) target = $region45
    $region44: #{tpu_custom_call.1} parent=1 // pred_region
      %91 = dma.done [#allocation4], 1024
    $region45: #{tpu_custom_call.1} parent=1 // pred_fallthru
      _
    // Predicated region
    $region46: #{tpu_custom_call.1} parent=1 // pred_check
      _
    $region47: #{tpu_custom_call.1} parent=1 // pred_check_branch
      %93 = sbr.rel (0) target = $region49
    $region48: #{tpu_custom_call.1} parent=1 // pred_region
      %94 = dma.done [#allocation7], 128
    $region49: #{tpu_custom_call.1} parent=1 // pred_fallthru
      _
    // Predicated region
    $region50: #{tpu_custom_call.1} parent=1 // pred_check
      _
    $region51: #{tpu_custom_call.1} parent=1 // pred_check_branch
      %96 = sbr.rel (0) target = $region53
    $region52: #{tpu_custom_call.1} parent=1 // pred_region
      %97 = dma.done [#allocation7], 2048
    $region53: #{tpu_custom_call.1} parent=1 // pred_fallthru
      _
    // Predicated region
    $region54: #{tpu_custom_call.1} parent=1 // pred_check
      _
    $region55: #{tpu_custom_call.1} parent=1 // pred_check_branch
      %99 = sbr.rel (0) target = $region57
    $region56: #{tpu_custom_call.1} parent=1 // pred_region
      %100 = dma.done [#allocation10], 2048
    $region57: #{tpu_custom_call.1} parent=1 // pred_fallthru
      _
    // Predicated region
    $region58: #{tpu_custom_call.1} parent=1 // pred_check
      _
    $region59: #{tpu_custom_call.1} parent=1 // pred_check_branch
      %102 = sbr.rel (0) target = $region61
    $region60: #{tpu_custom_call.1} parent=1 // pred_region
      %103 = dma.done [#allocation10], 2048
    $region61: #{tpu_custom_call.1} parent=1 // pred_fallthru
      _
    %v104 = vld [vmem:[#allocation3] sm:$0xff]
    %v105 = vld [vmem:[#allocation3 + $0x8] sm:$0xff]
    %v106 = vld [vmem:[#allocation3 + $0x10] sm:$0xff]
    %v107 = vld [vmem:[#allocation3 + $0x18] sm:$0xff]
    %v108 = vld [vmem:[#allocation3 + $0x20] sm:$0xff]
    %v109 = vld [vmem:[#allocation3 + $0x28] sm:$0xff]
    %v110 = vld [vmem:[#allocation3 + $0x30] sm:$0xff]
    %v111 = vld [vmem:[#allocation3 + $0x38] sm:$0xff]
    %v112 = vld [vmem:[#allocation8] sm:$0xff]
    %v113 = vld [vmem:[#allocation8 + $0x8] sm:$0xff]
    %v114 = vld [vmem:[#allocation8 + $0x10] sm:$0xff]
    %v115 = vld [vmem:[#allocation8 + $0x18] sm:$0xff]
    %v116 = vld [vmem:[#allocation8 + $0x20] sm:$0xff]
    %v117 = vld [vmem:[#allocation8 + $0x28] sm:$0xff]
    %v118 = vld [vmem:[#allocation8 + $0x30] sm:$0xff]
    %v119 = vld [vmem:[#allocation8 + $0x38] sm:$0xff]
    %v120 = vld [vmem:[#allocation8 + $0x40] sm:$0xff]
    %v121 = vld [vmem:[#allocation8 + $0x48] sm:$0xff]
    %v122 = vld [vmem:[#allocation8 + $0x50] sm:$0xff]
    %v123 = vld [vmem:[#allocation8 + $0x58] sm:$0xff]
    %v124 = vld [vmem:[#allocation8 + $0x60] sm:$0xff]
    %v125 = vld [vmem:[#allocation8 + $0x68] sm:$0xff]
    %v126 = vld [vmem:[#allocation8 + $0x70] sm:$0xff]
    %v127 = vld [vmem:[#allocation8 + $0x78] sm:$0xff]
    %v128 = vld [vmem:[%s3] sm:$0x1]
    %v130 = vlaneseq
    %v131 = vshrl.u32 %v130, 7
    %v132 = vsub.s32 0, %v131
    %v133 = vrot.slane %v128, %v132
    %135 = vmatprep.subr.mxu0 0.0
    %136 = vmatpush1.msra.mxu0 %v127
    %137 = vmatprep.subr.mxu0 0.0
    %138 = vmatpush1.msra.mxu0 %v126
    %139 = vmatprep.subr.mxu0 0.0
    %140 = vmatpush1.msra.mxu0 %v125
    %141 = vmatprep.subr.mxu0 0.0
    %142 = vmatpush1.msra.mxu0 %v124
    %143 = vmatprep.subr.mxu0 0.0
    %144 = vmatpush1.msra.mxu0 %v123
    %145 = vmatprep.subr.mxu0 0.0
    %146 = vmatpush1.msra.mxu0 %v122
    %147 = vmatprep.subr.mxu0 0.0
    %148 = vmatpush1.msra.mxu0 %v121
    %149 = vmatprep.subr.mxu0 0.0
    %150 = vmatpush1.msra.mxu0 %v120
    %151 = vmatprep.subr.mxu0 0.0
    %152 = vmatpush1.msra.mxu0 %v119
    %153 = vmatprep.subr.mxu0 0.0
    %154 = vmatpush1.msra.mxu0 %v118
    %155 = vmatprep.subr.mxu0 0.0
    %156 = vmatpush1.msra.mxu0 %v117
    %157 = vmatprep.subr.mxu0 0.0
    %158 = vmatpush1.msra.mxu0 %v116
    %159 = vmatprep.subr.mxu0 0.0
    %160 = vmatpush1.msra.mxu0 %v115
    %161 = vmatprep.subr.mxu0 0.0
    %162 = vmatpush1.msra.mxu0 %v114
    %163 = vmatprep.subr.mxu0 0.0
    %164 = vmatpush1.msra.mxu0 %v113
    %165 = vmatprep.subr.mxu0 0.0
    %166 = vmatpush1.msra.mxu0 %v112
    %167 = vmatprep.subr.mxu0 0.0
    %168 = vmatpush2.msra.mxu0 0.0
    %169 = vmatprep.subr.mxu0 0.0
    %170 = vmatpush2.msra.mxu0 0.0
    %171 = vmatprep.subr.mxu0 0.0
    %172 = vmatpush2.msra.mxu0 0.0
    %173 = vmatprep.subr.mxu0 0.0
    %174 = vmatpush2.msra.mxu0 0.0
    %175 = vmatprep.subr.mxu0 0.0
    %176 = vmatpush2.msra.mxu0 0.0
    %177 = vmatprep.subr.mxu0 0.0
    %178 = vmatpush2.msra.mxu0 0.0
    %179 = vmatprep.subr.mxu0 0.0
    %180 = vmatpush2.msra.mxu0 0.0
    %181 = vmatprep.subr.mxu0 0.0
    %182 = vmatpush2.msra.mxu0 0.0
    %183 = vmatprep.subr.mxu0 0.0
    %184 = vmatpush2.msra.mxu0 0.0
    %185 = vmatprep.subr.mxu0 0.0
    %186 = vmatpush2.msra.mxu0 0.0
    %187 = vmatprep.subr.mxu0 0.0
    %188 = vmatpush2.msra.mxu0 0.0
    %189 = vmatprep.subr.mxu0 0.0
    %190 = vmatpush2.msra.mxu0 0.0
    %191 = vmatprep.subr.mxu0 0.0
    %192 = vmatpush2.msra.mxu0 0.0
    %193 = vmatprep.subr.mxu0 0.0
    %194 = vmatpush2.msra.mxu0 0.0
    %195 = vmatprep.subr.mxu0 0.0
    %196 = vmatpush2.msra.mxu0 0.0
    %197 = vmatprep.subr.mxu0 0.0
    %198 = vmatpush2.msra.mxu0 0.0
    %199 = vmatprep.mubr.f32.mxu0 0.0
    %200 = vmatmul.mubr.f32.gmra.mxu0 %v104
    %v201 = vpop.f32.mrf.mxu0
    %v202 = vadd.f32 %v133, %v201
    %v203 = vpop.f32.mrf.mxu0
    %204 = vmatprep.mubr.f32.mxu0 0.0
    %205 = vmatmul.mubr.f32.gmra.mxu0 %v105
    %v206 = vpop.f32.mrf.mxu0
    %v207 = vadd.f32 %v133, %v206
    %v208 = vpop.f32.mrf.mxu0
    %209 = vmatprep.mubr.f32.mxu0 0.0
    %210 = vmatmul.mubr.f32.gmra.mxu0 %v106
    %v211 = vpop.f32.mrf.mxu0
    %v212 = vadd.f32 %v133, %v211
    %v213 = vpop.f32.mrf.mxu0
    %214 = vmatprep.mubr.f32.mxu0 0.0
    %215 = vmatmul.mubr.f32.gmra.mxu0 %v107
    %v216 = vpop.f32.mrf.mxu0
    %v217 = vadd.f32 %v133, %v216
    %v218 = vpop.f32.mrf.mxu0
    %219 = vmatprep.mubr.f32.mxu0 0.0
    %220 = vmatmul.mubr.f32.gmra.mxu0 %v108
    %v221 = vpop.f32.mrf.mxu0
    %v222 = vadd.f32 %v133, %v221
    %v223 = vpop.f32.mrf.mxu0
    %224 = vmatprep.mubr.f32.mxu0 0.0
    %225 = vmatmul.mubr.f32.gmra.mxu0 %v109
    %v226 = vpop.f32.mrf.mxu0
    %v227 = vadd.f32 %v133, %v226
    %v228 = vpop.f32.mrf.mxu0
    %229 = vmatprep.mubr.f32.mxu0 0.0
    %230 = vmatmul.mubr.f32.gmra.mxu0 %v110
    %v231 = vpop.f32.mrf.mxu0
    %v232 = vadd.f32 %v133, %v231
    %v233 = vpop.f32.mrf.mxu0
    %234 = vmatprep.mubr.f32.mxu0 0.0
    %235 = vmatmul.mubr.f32.gmra.mxu0 %v111
    %v236 = vpop.f32.mrf.mxu0
    %v237 = vadd.f32 %v133, %v236
    %v238 = vpop.f32.mrf.mxu0
    %239 = vdwg.mxu0
    %v240 = vmax.f32 %v202, 0.0
    %v241 = vmax.f32 %v207, 0.0
    %v242 = vmax.f32 %v212, 0.0
    %v243 = vmax.f32 %v217, 0.0
    %v244 = vmax.f32 %v222, 0.0
    %v245 = vmax.f32 %v227, 0.0
    %v246 = vmax.f32 %v232, 0.0
    %v247 = vmax.f32 %v237, 0.0
    %v248 = vld [vmem:[#allocation9] sm:$0xff]
    %v249 = vld [vmem:[#allocation9 + $0x8] sm:$0xff]
    %v250 = vld [vmem:[#allocation9 + $0x10] sm:$0xff]
    %v251 = vld [vmem:[#allocation9 + $0x18] sm:$0xff]
    %v252 = vld [vmem:[#allocation9 + $0x20] sm:$0xff]
    %v253 = vld [vmem:[#allocation9 + $0x28] sm:$0xff]
    %v254 = vld [vmem:[#allocation9 + $0x30] sm:$0xff]
    %v255 = vld [vmem:[#allocation9 + $0x38] sm:$0xff]
    %v256 = vld [vmem:[#allocation9 + $0x40] sm:$0xff]
    %v257 = vld [vmem:[#allocation9 + $0x48] sm:$0xff]
    %v258 = vld [vmem:[#allocation9 + $0x50] sm:$0xff]
    %v259 = vld [vmem:[#allocation9 + $0x58] sm:$0xff]
    %v260 = vld [vmem:[#allocation9 + $0x60] sm:$0xff]
    %v261 = vld [vmem:[#allocation9 + $0x68] sm:$0xff]
    %v262 = vld [vmem:[#allocation9 + $0x70] sm:$0xff]
    %v263 = vld [vmem:[#allocation9 + $0x78] sm:$0xff]
    %v264 = vld [vmem:[%s5] sm:$0x1]
    %v266 = vlaneseq
    %v267 = vshrl.u32 %v266, 7
    %v268 = vsub.s32 0, %v267
    %v269 = vrot.slane %v264, %v268
    %271 = vmatprep.subr.mxu0 0.0
    %272 = vmatpush1.msra.mxu0 %v263
    %273 = vmatprep.subr.mxu0 0.0
    %274 = vmatpush1.msra.mxu0 %v262
    %275 = vmatprep.subr.mxu0 0.0
    %276 = vmatpush1.msra.mxu0 %v261
    %277 = vmatprep.subr.mxu0 0.0
    %278 = vmatpush1.msra.mxu0 %v260
    %279 = vmatprep.subr.mxu0 0.0
    %280 = vmatpush1.msra.mxu0 %v259
    %281 = vmatprep.subr.mxu0 0.0
    %282 = vmatpush1.msra.mxu0 %v258
    %283 = vmatprep.subr.mxu0 0.0
    %284 = vmatpush1.msra.mxu0 %v257
    %285 = vmatprep.subr.mxu0 0.0
    %286 = vmatpush1.msra.mxu0 %v256
    %287 = vmatprep.subr.mxu0 0.0
    %288 = vmatpush1.msra.mxu0 %v255
    %289 = vmatprep.subr.mxu0 0.0
    %290 = vmatpush1.msra.mxu0 %v254
    %291 = vmatprep.subr.mxu0 0.0
    %292 = vmatpush1.msra.mxu0 %v253
    %293 = vmatprep.subr.mxu0 0.0
    %294 = vmatpush1.msra.mxu0 %v252
    %295 = vmatprep.subr.mxu0 0.0
    %296 = vmatpush1.msra.mxu0 %v251
    %297 = vmatprep.subr.mxu0 0.0
    %298 = vmatpush1.msra.mxu0 %v250
    %299 = vmatprep.subr.mxu0 0.0
    %300 = vmatpush1.msra.mxu0 %v249
    %301 = vmatprep.subr.mxu0 0.0
    %302 = vmatpush1.msra.mxu0 %v248
    %303 = vmatprep.subr.mxu0 0.0
    %304 = vmatpush2.msra.mxu0 0.0
    %305 = vmatprep.subr.mxu0 0.0
    %306 = vmatpush2.msra.mxu0 0.0
    %307 = vmatprep.subr.mxu0 0.0
    %308 = vmatpush2.msra.mxu0 0.0
    %309 = vmatprep.subr.mxu0 0.0
    %310 = vmatpush2.msra.mxu0 0.0
    %311 = vmatprep.subr.mxu0 0.0
    %312 = vmatpush2.msra.mxu0 0.0
    %313 = vmatprep.subr.mxu0 0.0
    %314 = vmatpush2.msra.mxu0 0.0
    %315 = vmatprep.subr.mxu0 0.0
    %316 = vmatpush2.msra.mxu0 0.0
    %317 = vmatprep.subr.mxu0 0.0
    %318 = vmatpush2.msra.mxu0 0.0
    %319 = vmatprep.subr.mxu0 0.0
    %320 = vmatpush2.msra.mxu0 0.0
    %321 = vmatprep.subr.mxu0 0.0
    %322 = vmatpush2.msra.mxu0 0.0
    %323 = vmatprep.subr.mxu0 0.0
    %324 = vmatpush2.msra.mxu0 0.0
    %325 = vmatprep.subr.mxu0 0.0
    %326 = vmatpush2.msra.mxu0 0.0
    %327 = vmatprep.subr.mxu0 0.0
    %328 = vmatpush2.msra.mxu0 0.0
    %329 = vmatprep.subr.mxu0 0.0
    %330 = vmatpush2.msra.mxu0 0.0
    %331 = vmatprep.subr.mxu0 0.0
    %332 = vmatpush2.msra.mxu0 0.0
    %333 = vmatprep.subr.mxu0 0.0
    %334 = vmatpush2.msra.mxu0 0.0
    %335 = vmatprep.mubr.f32.mxu0 0.0
    %336 = vmatmul.mubr.f32.gmra.mxu0 %v240
    %v337 = vpop.f32.mrf.mxu0
    %v338 = vadd.f32 %v269, %v337
    %v339 = vpop.f32.mrf.mxu0
    %340 = vmatprep.mubr.f32.mxu0 0.0
    %341 = vmatmul.mubr.f32.gmra.mxu0 %v241
    %v342 = vpop.f32.mrf.mxu0
    %v343 = vadd.f32 %v269, %v342
    %v344 = vpop.f32.mrf.mxu0
    %345 = vmatprep.mubr.f32.mxu0 0.0
    %346 = vmatmul.mubr.f32.gmra.mxu0 %v242
    %v347 = vpop.f32.mrf.mxu0
    %v348 = vadd.f32 %v269, %v347
    %v349 = vpop.f32.mrf.mxu0
    %350 = vmatprep.mubr.f32.mxu0 0.0
    %351 = vmatmul.mubr.f32.gmra.mxu0 %v243
    %v352 = vpop.f32.mrf.mxu0
    %v353 = vadd.f32 %v269, %v352
    %v354 = vpop.f32.mrf.mxu0
    %355 = vmatprep.mubr.f32.mxu0 0.0
    %356 = vmatmul.mubr.f32.gmra.mxu0 %v244
    %v357 = vpop.f32.mrf.mxu0
    %v358 = vadd.f32 %v269, %v357
    %v359 = vpop.f32.mrf.mxu0
    %360 = vmatprep.mubr.f32.mxu0 0.0
    %361 = vmatmul.mubr.f32.gmra.mxu0 %v245
    %v362 = vpop.f32.mrf.mxu0
    %v363 = vadd.f32 %v269, %v362
    %v364 = vpop.f32.mrf.mxu0
    %365 = vmatprep.mubr.f32.mxu0 0.0
    %366 = vmatmul.mubr.f32.gmra.mxu0 %v246
    %v367 = vpop.f32.mrf.mxu0
    %v368 = vadd.f32 %v269, %v367
    %v369 = vpop.f32.mrf.mxu0
    %370 = vmatprep.mubr.f32.mxu0 0.0
    %371 = vmatmul.mubr.f32.gmra.mxu0 %v247
    %v372 = vpop.f32.mrf.mxu0
    %v373 = vadd.f32 %v269, %v372
    %v374 = vpop.f32.mrf.mxu0
    %375 = vdwg.mxu0
    %v376 = vmax.f32 %v338, 0.0
    %v377 = vmax.f32 %v343, 0.0
    %v378 = vmax.f32 %v348, 0.0
    %v379 = vmax.f32 %v353, 0.0
    %v380 = vmax.f32 %v358, 0.0
    %v381 = vmax.f32 %v363, 0.0
    %v382 = vmax.f32 %v368, 0.0
    %v383 = vmax.f32 %v373, 0.0
    %v384 = vld [vmem:[#allocation11] sm:$0xff]
    %v385 = vld [vmem:[#allocation11 + $0x8] sm:$0xff]
    %v386 = vld [vmem:[#allocation11 + $0x10] sm:$0xff]
    %v387 = vld [vmem:[#allocation11 + $0x18] sm:$0xff]
    %v388 = vld [vmem:[#allocation11 + $0x20] sm:$0xff]
    %v389 = vld [vmem:[#allocation11 + $0x28] sm:$0xff]
    %v390 = vld [vmem:[#allocation11 + $0x30] sm:$0xff]
    %v391 = vld [vmem:[#allocation11 + $0x38] sm:$0xff]
    %v392 = vld [vmem:[#allocation11 + $0x40] sm:$0xff]
    %v393 = vld [vmem:[#allocation11 + $0x48] sm:$0xff]
    %v394 = vld [vmem:[#allocation11 + $0x50] sm:$0xff]
    %v395 = vld [vmem:[#allocation11 + $0x58] sm:$0xff]
    %v396 = vld [vmem:[#allocation11 + $0x60] sm:$0xff]
    %v397 = vld [vmem:[#allocation11 + $0x68] sm:$0xff]
    %v398 = vld [vmem:[#allocation11 + $0x70] sm:$0xff]
    %v399 = vld [vmem:[#allocation11 + $0x78] sm:$0xff]
    %v400 = vld [vmem:[%s7] sm:$0x1]
    %v402 = vlaneseq
    %v403 = vshrl.u32 %v402, 7
    %v404 = vsub.s32 0, %v403
    %v405 = vrot.slane %v400, %v404
    %407 = vmatprep.subr.mxu0 0.0
    %408 = vmatpush1.msra.mxu0 %v399
    %409 = vmatprep.subr.mxu0 0.0
    %410 = vmatpush1.msra.mxu0 %v398
    %411 = vmatprep.subr.mxu0 0.0
    %412 = vmatpush1.msra.mxu0 %v397
    %413 = vmatprep.subr.mxu0 0.0
    %414 = vmatpush1.msra.mxu0 %v396
    %415 = vmatprep.subr.mxu0 0.0
    %416 = vmatpush1.msra.mxu0 %v395
    %417 = vmatprep.subr.mxu0 0.0
    %418 = vmatpush1.msra.mxu0 %v394
    %419 = vmatprep.subr.mxu0 0.0
    %420 = vmatpush1.msra.mxu0 %v393
    %421 = vmatprep.subr.mxu0 0.0
    %422 = vmatpush1.msra.mxu0 %v392
    %423 = vmatprep.subr.mxu0 0.0
    %424 = vmatpush1.msra.mxu0 %v391
    %425 = vmatprep.subr.mxu0 0.0
    %426 = vmatpush1.msra.mxu0 %v390
    %427 = vmatprep.subr.mxu0 0.0
    %428 = vmatpush1.msra.mxu0 %v389
    %429 = vmatprep.subr.mxu0 0.0
    %430 = vmatpush1.msra.mxu0 %v388
    %431 = vmatprep.subr.mxu0 0.0
    %432 = vmatpush1.msra.mxu0 %v387
    %433 = vmatprep.subr.mxu0 0.0
    %434 = vmatpush1.msra.mxu0 %v386
    %435 = vmatprep.subr.mxu0 0.0
    %436 = vmatpush1.msra.mxu0 %v385
    %437 = vmatprep.subr.mxu0 0.0
    %438 = vmatpush1.msra.mxu0 %v384
    %439 = vmatprep.subr.mxu0 0.0
    %440 = vmatpush2.msra.mxu0 0.0
    %441 = vmatprep.subr.mxu0 0.0
    %442 = vmatpush2.msra.mxu0 0.0
    %443 = vmatprep.subr.mxu0 0.0
    %444 = vmatpush2.msra.mxu0 0.0
    %445 = vmatprep.subr.mxu0 0.0
    %446 = vmatpush2.msra.mxu0 0.0
    %447 = vmatprep.subr.mxu0 0.0
    %448 = vmatpush2.msra.mxu0 0.0
    %449 = vmatprep.subr.mxu0 0.0
    %450 = vmatpush2.msra.mxu0 0.0
    %451 = vmatprep.subr.mxu0 0.0
    %452 = vmatpush2.msra.mxu0 0.0
    %453 = vmatprep.subr.mxu0 0.0
    %454 = vmatpush2.msra.mxu0 0.0
    %455 = vmatprep.subr.mxu0 0.0
    %456 = vmatpush2.msra.mxu0 0.0
    %457 = vmatprep.subr.mxu0 0.0
    %458 = vmatpush2.msra.mxu0 0.0
    %459 = vmatprep.subr.mxu0 0.0
    %460 = vmatpush2.msra.mxu0 0.0
    %461 = vmatprep.subr.mxu0 0.0
    %462 = vmatpush2.msra.mxu0 0.0
    %463 = vmatprep.subr.mxu0 0.0
    %464 = vmatpush2.msra.mxu0 0.0
    %465 = vmatprep.subr.mxu0 0.0
    %466 = vmatpush2.msra.mxu0 0.0
    %467 = vmatprep.subr.mxu0 0.0
    %468 = vmatpush2.msra.mxu0 0.0
    %469 = vmatprep.subr.mxu0 0.0
    %470 = vmatpush2.msra.mxu0 0.0
    %471 = vmatprep.mubr.f32.mxu0 0.0
    %472 = vmatmul.mubr.f32.gmra.mxu0 %v376
    %v473 = vpop.f32.mrf.mxu0
    %v474 = vadd.f32 %v405, %v473
    %v475 = vpop.f32.mrf.mxu0
    %476 = vmatprep.mubr.f32.mxu0 0.0
    %477 = vmatmul.mubr.f32.gmra.mxu0 %v377
    %v478 = vpop.f32.mrf.mxu0
    %v479 = vadd.f32 %v405, %v478
    %v480 = vpop.f32.mrf.mxu0
    %481 = vmatprep.mubr.f32.mxu0 0.0
    %482 = vmatmul.mubr.f32.gmra.mxu0 %v378
    %v483 = vpop.f32.mrf.mxu0
    %v484 = vadd.f32 %v405, %v483
    %v485 = vpop.f32.mrf.mxu0
    %486 = vmatprep.mubr.f32.mxu0 0.0
    %487 = vmatmul.mubr.f32.gmra.mxu0 %v379
    %v488 = vpop.f32.mrf.mxu0
    %v489 = vadd.f32 %v405, %v488
    %v490 = vpop.f32.mrf.mxu0
    %491 = vmatprep.mubr.f32.mxu0 0.0
    %492 = vmatmul.mubr.f32.gmra.mxu0 %v380
    %v493 = vpop.f32.mrf.mxu0
    %v494 = vadd.f32 %v405, %v493
    %v495 = vpop.f32.mrf.mxu0
    %496 = vmatprep.mubr.f32.mxu0 0.0
    %497 = vmatmul.mubr.f32.gmra.mxu0 %v381
    %v498 = vpop.f32.mrf.mxu0
    %v499 = vadd.f32 %v405, %v498
    %v500 = vpop.f32.mrf.mxu0
    %501 = vmatprep.mubr.f32.mxu0 0.0
    %502 = vmatmul.mubr.f32.gmra.mxu0 %v382
    %v503 = vpop.f32.mrf.mxu0
    %v504 = vadd.f32 %v405, %v503
    %v505 = vpop.f32.mrf.mxu0
    %506 = vmatprep.mubr.f32.mxu0 0.0
    %507 = vmatmul.mubr.f32.gmra.mxu0 %v383
    %v508 = vpop.f32.mrf.mxu0
    %v509 = vadd.f32 %v405, %v508
    %v510 = vpop.f32.mrf.mxu0
    %511 = vdwg.mxu0
    %v512 = vmax.f32 %v474, 0.0
    %v513 = vmax.f32 %v479, 0.0
    %v514 = vmax.f32 %v484, 0.0
    %v515 = vmax.f32 %v489, 0.0
    %v516 = vmax.f32 %v494, 0.0
    %v517 = vmax.f32 %v499, 0.0
    %v518 = vmax.f32 %v504, 0.0
    %v519 = vmax.f32 %v509, 0.0
    %v520 = vld [vmem:[%s8] sm:$0x1]
    %v522 = vlaneseq
    %v523 = vshrl.u32 %v522, 7
    %v524 = vsub.s32 0, %v523
    %v525 = vrot.slane %v520, %v524
    %v527 = vmul.f32 %v512, %v525
    %v528 = vmul.f32 %v513, %v525
    %v529 = vmul.f32 %v514, %v525
    %v530 = vmul.f32 %v515, %v525
    %v531 = vmul.f32 %v516, %v525
    %v532 = vmul.f32 %v517, %v525
    %v533 = vmul.f32 %v518, %v525
    %v534 = vmul.f32 %v519, %v525
    %535 = vadd.xlane.f32.xlu0 %v527
    %v536 = vpop.xlane.xlu0 %535
    %537 = vadd.xlane.f32.xlu0 %v528
    %v538 = vpop.xlane.xlu0 %537
    %539 = vadd.xlane.f32.xlu0 %v529
    %v540 = vpop.xlane.xlu0 %539
    %541 = vadd.xlane.f32.xlu0 %v530
    %v542 = vpop.xlane.xlu0 %541
    %543 = vadd.xlane.f32.xlu0 %v531
    %v544 = vpop.xlane.xlu0 %543
    %545 = vadd.xlane.f32.xlu0 %v532
    %v546 = vpop.xlane.xlu0 %545
    %547 = vadd.xlane.f32.xlu0 %v533
    %v548 = vpop.xlane.xlu0 %547
    %549 = vadd.xlane.f32.xlu0 %v534
    %v550 = vpop.xlane.xlu0 %549
    %v551 = vld [vmem:[#allocation2] sm:$0x1]
    %v553 = vlaneseq
    %v554 = vshrl.u32 %v553, 7
    %v555 = vsub.s32 0, %v554
    %v556 = vrot.slane %v551, %v555
    %557 = vset.pattern.permute.xlu0 0
    %558 = vperm.xlu0 %557, %v556
    %v559 = vpop.permute.xlu0 %558
    %v561 = vadd.f32 %v536, %v559
    %v562 = vadd.f32 %v538, %v559
    %v563 = vadd.f32 %v540, %v559
    %v564 = vadd.f32 %v542, %v559
    %v565 = vadd.f32 %v544, %v559
    %v566 = vadd.f32 %v546, %v559
    %v567 = vadd.f32 %v548, %v559
    %v568 = vadd.f32 %v550, %v559
    %v569 = vld [vmem:[#allocation6] sm:$0xff]
    %v571 = vlaneseq
    %v572 = vshrl.u32 %v571, 7
    %v573 = vsub.s32 0, %v572
    %v574 = vrot.slane %v569, %v573
    %576 = vbcast.lane.b32.xlu0 %v574, 256
    %v577 = vpop.permute.xlu0 %576
    %v578 = vlaneseq
    %v579 = vshrl.u32 %v578, 7
    %v580 = vsub.s32 1, %v579
    %v581 = vrot.slane %v569, %v580
    %583 = vbcast.lane.b32.xlu0 %v581, 256
    %v584 = vpop.permute.xlu0 %583
    %v585 = vlaneseq
    %v586 = vshrl.u32 %v585, 7
    %v587 = vsub.s32 2, %v586
    %v588 = vrot.slane %v569, %v587
    %590 = vbcast.lane.b32.xlu0 %v588, 256
    %v591 = vpop.permute.xlu0 %590
    %v592 = vlaneseq
    %v593 = vshrl.u32 %v592, 7
    %v594 = vsub.s32 3, %v593
    %v595 = vrot.slane %v569, %v594
    %597 = vbcast.lane.b32.xlu0 %v595, 256
    %v598 = vpop.permute.xlu0 %597
    %v599 = vlaneseq
    %v600 = vshrl.u32 %v599, 7
    %v601 = vsub.s32 4, %v600
    %v602 = vrot.slane %v569, %v601
    %604 = vbcast.lane.b32.xlu0 %v602, 256
    %v605 = vpop.permute.xlu0 %604
    %v606 = vlaneseq
    %v607 = vshrl.u32 %v606, 7
    %v608 = vsub.s32 5, %v607
    %v609 = vrot.slane %v569, %v608
    %611 = vbcast.lane.b32.xlu0 %v609, 256
    %v612 = vpop.permute.xlu0 %611
    %v613 = vlaneseq
    %v614 = vshrl.u32 %v613, 7
    %v615 = vsub.s32 6, %v614
    %v616 = vrot.slane %v569, %v615
    %618 = vbcast.lane.b32.xlu0 %v616, 256
    %v619 = vpop.permute.xlu0 %618
    %v620 = vlaneseq
    %v621 = vshrl.u32 %v620, 7
    %v622 = vsub.s32 7, %v621
    %v623 = vrot.slane %v569, %v622
    %625 = vbcast.lane.b32.xlu0 %v623, 256
    %v626 = vpop.permute.xlu0 %625
    %v635 = vmul.f32 %v561, %v577
    %v636 = vmul.f32 %v562, %v584
    %v637 = vmul.f32 %v563, %v591
    %v638 = vmul.f32 %v564, %v598
    %v639 = vmul.f32 %v565, %v605
    %v640 = vmul.f32 %v566, %v612
    %v641 = vmul.f32 %v567, %v619
    %v642 = vmul.f32 %v568, %v626
    %651 = vset.pattern.permute.xlu0 0
    %652 = vperm.xlu0 %651, %v635
    %v653 = vpop.permute.xlu0 %652
    %654 = vset.pattern.permute.xlu0 0
    %655 = vperm.xlu0 %654, %v636
    %v656 = vpop.permute.xlu0 %655
    %657 = vset.pattern.permute.xlu0 0
    %658 = vperm.xlu0 %657, %v637
    %v659 = vpop.permute.xlu0 %658
    %660 = vset.pattern.permute.xlu0 0
    %661 = vperm.xlu0 %660, %v638
    %v662 = vpop.permute.xlu0 %661
    %663 = vset.pattern.permute.xlu0 0
    %664 = vperm.xlu0 %663, %v639
    %v665 = vpop.permute.xlu0 %664
    %666 = vset.pattern.permute.xlu0 0
    %667 = vperm.xlu0 %666, %v640
    %v668 = vpop.permute.xlu0 %667
    %669 = vset.pattern.permute.xlu0 0
    %670 = vperm.xlu0 %669, %v641
    %v671 = vpop.permute.xlu0 %670
    %672 = vset.pattern.permute.xlu0 0
    %673 = vperm.xlu0 %672, %v642
    %v674 = vpop.permute.xlu0 %673
    %v675 = vlaneseq
    %v676 = vand.u32 %v675, 127
    %v677 = vlaneseq
    %v678 = vshrl.u32 %v677, 7
    %v679 = vsub.s32 %v676, %v678
    %v680 = vrot.slane %v653, %v679
    %v681 = vlaneseq
    %v682 = vshrl.u32 %v681, 7
    %v683 = vsub.s32 %v676, %v682
    %v684 = vrot.slane %v656, %v683
    %v685 = vlaneseq
    %v686 = vshrl.u32 %v685, 7
    %v687 = vsub.s32 %v676, %v686
    %v688 = vrot.slane %v659, %v687
    %v689 = vlaneseq
    %v690 = vshrl.u32 %v689, 7
    %v691 = vsub.s32 %v676, %v690
    %v692 = vrot.slane %v662, %v691
    %v693 = vlaneseq
    %v694 = vshrl.u32 %v693, 7
    %v695 = vsub.s32 %v676, %v694
    %v696 = vrot.slane %v665, %v695
    %v697 = vlaneseq
    %v698 = vshrl.u32 %v697, 7
    %v699 = vsub.s32 %v676, %v698
    %v700 = vrot.slane %v668, %v699
    %v701 = vlaneseq
    %v702 = vshrl.u32 %v701, 7
    %v703 = vsub.s32 %v676, %v702
    %v704 = vrot.slane %v671, %v703
    %v705 = vlaneseq
    %v706 = vshrl.u32 %v705, 7
    %v707 = vsub.s32 %v676, %v706
    %v708 = vrot.slane %v674, %v707
    %vm709 = vcmask 1041409
    %v710 = vsel %vm709, %v684, %v680
    %vm711 = vcmask 1042434
    %v712 = vsel %vm711, %v688, %v710
    %vm713 = vcmask 1043459
    %v714 = vsel %vm713, %v692, %v712
    %vm715 = vcmask 1044484
    %v716 = vsel %vm715, %v696, %v714
    %vm717 = vcmask 1045509
    %v718 = vsel %vm717, %v700, %v716
    %vm719 = vcmask 1046534
    %v720 = vsel %vm719, %v704, %v718
    %vm721 = vcmask 1047559
    %v722 = vsel %vm721, %v708, %v720
    %vm724 = vcmask 64512
    %v725 = vsel %vm724, %v722, 0.0
    %726 = vadd.xlane.f32.xlu0 %v725
    %v727 = vpop.xlane.xlu0 %726
    %v729 = vlaneseq
    %v730 = vshrl.u32 %v729, 7
    %v731 = vsub.s32 %v676, %v730
    %v732 = vrot.slane %v727, %v731
    %vm734 = vcmask 57344
    %735 = vst.msk [vmem:[#allocation12] sm:$0x1] %vm734, %v732
    // Predicated region
    $region62: #{tpu_custom_call.1} parent=1 // pred_check
      _
    $region63: #{tpu_custom_call.1} parent=1 // pred_check_branch
      %737 = sbr.rel (0) target = $region65
    $region64: #{tpu_custom_call.1} parent=1 // pred_region
      %s739 = ssub.s32 16, 16
      %740 = vsyncadd [#allocation5], %s739
      %s742 = sshll.u32 [#allocation12], 4
      %s743 = int_to_ptr.vmem [resolvable:$true] %s742
      %745 = dma.vmem_to_hbm [thread:$0]  %s743, 16, %s10, [#allocation5]
    $region65: #{tpu_custom_call.1} parent=1 // pred_fallthru
      _
    // Predicated region
    $region66: #{tpu_custom_call.1} parent=1 // pred_check
      _
    $region67: #{tpu_custom_call.1} parent=1 // pred_check_branch
      %747 = sbr.rel (0) target = $region69
    $region68: #{tpu_custom_call.1} parent=1 // pred_region
      %748 = dma.done [#allocation5], 16
    $region69: #{tpu_custom_call.1} parent=1 // pred_fallthru
      _
    %749 = vsyncpa [#allocation4], 1
    %750 = vsyncpa [#allocation7], 1
    %751 = vsyncpa [#allocation10], 1
    %752 = vsyncpa [#allocation5], 1

</llo_original>
